<compile_context>
chip_gen: v7x
topology: tpu7x:2x2x1
jax: 0.10.0
libtpu: 0.0.40
codegen_flags: <defaults>
</compile_context>

<pallas_src>
import math
from functools import partial

import jax
import jax.numpy as jnp
from jax.experimental import pallas as pl
from jax.experimental.pallas import tpu as pltpu


# ----------------------------- tiling helper ------------------------------

def _choose_tile(dim, target, align):
    """Largest tile <= target that divides dim and is `align`-aligned; else full."""
    if dim <= target:
        return dim
    t = (target // align) * align
    while t >= align:
        if dim % t == 0:
            return t
        t -= align
    return dim


# ------------- kernel 1: LN1 + multi-head attention + out-proj ------------

def _attn_layer_kernel(x_ref, g_ref, b_ref,
                       wq_ref, wk_ref, wv_ref, bq_ref, bk_ref, bv_ref,
                       wo_ref, bo_ref, o_ref,
                       xn_scr, mask_scr, acc_scr):
    """Grid (B, H), H innermost ('arbitrary').  Whole attention sublayer.

    x_ref : (1, S, E) bf16 residual stream (resident across the head axis).
    w{q,k,v}_ref : (1, E, dh) bf16 per-head projection (Q pre-scaled by 1/sqrt(dh)).
    wo_ref : (1, dh, E) bf16 per-head slice of the output projection.
    """
    h = pl.program_id(1)

    @pl.when(h == 0)
    def _():
        # LayerNorm computed once per batch block, cached in bf16 scratch.
        x = x_ref[0].astype(jnp.float32)                         # (S, E)
        mu = jnp.mean(x, axis=-1, keepdims=True)
        var = jnp.mean(jnp.square(x - mu), axis=-1, keepdims=True)
        xn = (x - mu) * jax.lax.rsqrt(var + 1e-5) * g_ref[...] + b_ref[...]
        xn_scr[...] = xn.astype(jnp.bfloat16)
        # Additive causal mask, finite large-negative, cached for all heads.
        S = x_ref.shape[1]
        row = jax.lax.broadcasted_iota(jnp.int32, (S, S), 0)
        col = jax.lax.broadcasted_iota(jnp.int32, (S, S), 1)
        mask_scr[...] = jnp.where(row >= col, 0.0, -1e30).astype(jnp.float32)
        acc_scr[...] = jnp.zeros_like(acc_scr)

    xn = xn_scr[...]                                             # (S, E) bf16
    # Per-head projections; scale is folded into wq/bq at weight-build time.
    q = jnp.dot(xn, wq_ref[0], preferred_element_type=jnp.float32) + bq_ref[0]
    k = jnp.dot(xn, wk_ref[0], preferred_element_type=jnp.float32) + bk_ref[0]
    v = jnp.dot(xn, wv_ref[0], preferred_element_type=jnp.float32) + bv_ref[0]

    # Scores = q · k^T (contract last dims; no transposed K materialized).
    s = jax.lax.dot_general(q.astype(jnp.bfloat16), k.astype(jnp.bfloat16),
                            (((1,), (1,)), ((), ())),
                            preferred_element_type=jnp.float32)   # (S, S)
    s = s + mask_scr[...]
    m = jnp.max(s, axis=-1, keepdims=True)
    p = jnp.exp(s - m)
    l = jnp.sum(p, axis=-1, keepdims=True)
    ctx = jnp.dot(p.astype(jnp.bfloat16), v.astype(jnp.bfloat16),
                  preferred_element_type=jnp.float32)             # (S, dh)
    ctx = ctx * pl.reciprocal(l, approx=True)                     # O(S*dh)
    # Per-head contribution of the output projection, accumulated in f32.
    acc_scr[...] += jnp.dot(ctx.astype(jnp.bfloat16), wo_ref[0],
                            preferred_element_type=jnp.float32)

    @pl.when(h == pl.num_programs(1) - 1)
    def _():
        o_ref[0] = (x_ref[0].astype(jnp.float32) + acc_scr[...]
                    + bo_ref[...]).astype(o_ref.dtype)


def pallas_attn_layer(x, ln_g, ln_b, wq, wk, wv, bq, bk, bv, wo, bo):
    B, S, E = x.shape
    H, _, dh = wq.shape
    return pl.pallas_call(
        _attn_layer_kernel,
        out_shape=jax.ShapeDtypeStruct((B, S, E), jnp.bfloat16),
        grid=(B, H),
        in_specs=[
            pl.BlockSpec((1, S, E), lambda b, h: (b, 0, 0)),
            pl.BlockSpec((1, E), lambda b, h: (0, 0)),
            pl.BlockSpec((1, E), lambda b, h: (0, 0)),
            pl.BlockSpec((1, E, dh), lambda b, h: (h, 0, 0)),
            pl.BlockSpec((1, E, dh), lambda b, h: (h, 0, 0)),
            pl.BlockSpec((1, E, dh), lambda b, h: (h, 0, 0)),
            pl.BlockSpec((1, 1, dh), lambda b, h: (h, 0, 0)),
            pl.BlockSpec((1, 1, dh), lambda b, h: (h, 0, 0)),
            pl.BlockSpec((1, 1, dh), lambda b, h: (h, 0, 0)),
            pl.BlockSpec((1, dh, E), lambda b, h: (h, 0, 0)),
            pl.BlockSpec((1, E), lambda b, h: (0, 0)),
        ],
        out_specs=pl.BlockSpec((1, S, E), lambda b, h: (b, 0, 0)),
        scratch_shapes=[pltpu.VMEM((S, E), jnp.bfloat16),   # cached LN(x)
                        pltpu.VMEM((S, S), jnp.float32),    # additive causal mask
                        pltpu.VMEM((S, E), jnp.float32)],   # out-proj accumulator
        compiler_params=pltpu.CompilerParams(
            dimension_semantics=("parallel", "arbitrary")),
    )(x, ln_g, ln_b, wq, wk, wv, bq, bk, bv, wo, bo)


# ----------------- kernel 2: LN2 + FFN (F-tiled) + residual ----------------

def _ffn_layer_kernel(x_ref, g_ref, b_ref, w1_ref, b1_ref, w2_ref, b2_ref,
                      o_ref, xn_scr, acc_scr):
    """Grid (B, S_tiles, F_tiles); F innermost reduction with f32 accumulator."""
    f = pl.program_id(2)

    @pl.when(f == 0)
    def _():
        x = x_ref[0].astype(jnp.float32)
        mu = jnp.mean(x, axis=-1, keepdims=True)
        var = jnp.mean(jnp.square(x - mu), axis=-1, keepdims=True)
        xn = (x - mu) * jax.lax.rsqrt(var + 1e-5) * g_ref[...] + b_ref[...]
        xn_scr[...] = xn.astype(jnp.bfloat16)
        acc_scr[...] = jnp.zeros_like(acc_scr)

    hdn = jnp.dot(xn_scr[...], w1_ref[...],
                  preferred_element_type=jnp.float32) + b1_ref[...]
    hdn = jnp.maximum(hdn, 0.0)
    acc_scr[...] += jnp.dot(hdn.astype(jnp.bfloat16), w2_ref[...],
                            preferred_element_type=jnp.float32)

    @pl.when(f == pl.num_programs(2) - 1)
    def _():
        o_ref[0] = (x_ref[0].astype(jnp.float32) + acc_scr[...]
                    + b2_ref[...]).astype(o_ref.dtype)


def pallas_ffn_layer(x, ln_g, ln_b, w1, b1, w2, b2):
    B, S, E = x.shape
    F = w1.shape[1]
    ts = _choose_tile(S, 256, 8)
    tf = _choose_tile(F, 512, 128)
    return pl.pallas_call(
        _ffn_layer_kernel,
        out_shape=jax.ShapeDtypeStruct((B, S, E), jnp.bfloat16),
        grid=(B, S // ts, F // tf),
        in_specs=[
            pl.BlockSpec((1, ts, E), lambda b, i, f: (b, i, 0)),
            pl.BlockSpec((1, E), lambda b, i, f: (0, 0)),
            pl.BlockSpec((1, E), lambda b, i, f: (0, 0)),
            pl.BlockSpec((E, tf), lambda b, i, f: (0, f)),
            pl.BlockSpec((1, tf), lambda b, i, f: (0, f)),
            pl.BlockSpec((tf, E), lambda b, i, f: (f, 0)),
            pl.BlockSpec((1, E), lambda b, i, f: (0, 0)),
        ],
        out_specs=pl.BlockSpec((1, ts, E), lambda b, i, f: (b, i, 0)),
        scratch_shapes=[pltpu.VMEM((ts, E), jnp.bfloat16),   # cached LN(x)
                        pltpu.VMEM((ts, E), jnp.float32)],   # FFN accumulator
        compiler_params=pltpu.CompilerParams(
            dimension_semantics=("parallel", "parallel", "arbitrary")),
    )(x, ln_g, ln_b, w1, b1, w2, b2)


# ----------------------- generator: tiled linear ---------------------------

def _linear_kernel(x_ref, w_ref, b_ref, o_ref, acc_ref):
    @pl.when(pl.program_id(2) == 0)
    def _():
        acc_ref[...] = jnp.zeros_like(acc_ref)
    acc_ref[...] += jnp.dot(x_ref[...], w_ref[...],
                            preferred_element_type=jnp.float32)
    @pl.when(pl.program_id(2) == pl.num_programs(2) - 1)
    def _():
        o_ref[...] = (acc_ref[...] + b_ref[...]).astype(o_ref.dtype)


def pallas_linear(x2d, w, b):
    M, K = x2d.shape
    N = w.shape[1]          # already padded to a multiple of 128 (lane-dense)
    tm = _choose_tile(M, 512, 8)
    tn = _choose_tile(N, 512, 128)
    tk = _choose_tile(K, 512, 128)
    return pl.pallas_call(
        _linear_kernel,
        out_shape=jax.ShapeDtypeStruct((M, N), jnp.float32),
        grid=(M // tm, N // tn, K // tk),
        in_specs=[
            pl.BlockSpec((tm, tk), lambda i, j, k: (i, k)),
            pl.BlockSpec((tk, tn), lambda i, j, k: (k, j)),
            pl.BlockSpec((1, tn), lambda i, j, k: (0, j)),
        ],
        out_specs=pl.BlockSpec((tm, tn), lambda i, j, k: (i, j)),
        scratch_shapes=[pltpu.VMEM((tm, tn), jnp.float32)],
        compiler_params=pltpu.CompilerParams(
            dimension_semantics=("parallel", "parallel", "arbitrary")),
    )(x2d, w, b.reshape(1, N))


# ------------------------------ PHM helpers -------------------------------

def phm_weight(A, S):
    """W = sum_i kron(A_i, S_i).  A: (n,n,n), S: (n, out//n, in//n) -> (out, in)."""
    n = A.shape[0]
    out_n, in_n = S.shape[1], S.shape[2]
    return jnp.einsum("iab,icd->acbd", A, S).reshape(n * out_n, n * in_n)


def positional_encoding_table(maxlen, emb_size):
    den = jnp.exp(-jnp.arange(0, emb_size, 2, dtype=jnp.float32)
                  * (math.log(10000.0) / emb_size))
    pos = jnp.arange(maxlen, dtype=jnp.float32).reshape(maxlen, 1)
    pe = jnp.zeros((maxlen, emb_size), jnp.float32)
    pe = pe.at[:, 0::2].set(jnp.sin(pos * den))
    pe = pe.at[:, 1::2].set(jnp.cos(pos * den))
    return pe  # (maxlen, emb)


def xavier_uniform(key, shape):
    bound = math.sqrt(6.0 / (shape[-1] + shape[-2]))
    return jax.random.uniform(key, shape, jnp.float32, -bound, bound)


# ------------------------------ parameters --------------------------------

def init_params(key, *, n, nhead, num_layers, emb, vocab, ff, maxlen=512):
    keys = iter(jax.random.split(key, 16 + num_layers * 32))
    p = {}

    # PHMTokenEmbedding: table (vocab, emb) = sum_i kron(A_i, S_i)
    p["emb_A"] = xavier_uniform(next(keys), (n, n, n))
    p["emb_S"] = xavier_uniform(next(keys), (n, vocab // n, emb // n))

    # generator = PHMLinear(n, emb, vocab); bias zeroed by _init_weights
    p["gen_A"] = xavier_uniform(next(keys), (n, n, n))
    p["gen_S"] = xavier_uniform(next(keys), (n, vocab // n, emb // n))
    p["gen_b"] = jnp.zeros((vocab,), jnp.float32)

    layers = []
    for _ in range(num_layers):
        lp = {}
        for name in ("q", "k", "v", "o"):
            lp[f"{name}_A"] = xavier_uniform(next(keys), (n, n, n))
            lp[f"{name}_S"] = xavier_uniform(next(keys), (n, emb // n, emb // n))
            lp[f"{name}_b"] = jax.random.uniform(
                next(keys), (emb,), jnp.float32,
                -1.0 / math.sqrt(emb), 1.0 / math.sqrt(emb))
        lp["ff1_A"] = xavier_uniform(next(keys), (n, n, n))
        lp["ff1_S"] = xavier_uniform(next(keys), (n, ff // n, emb // n))
        lp["ff1_b"] = jax.random.uniform(next(keys), (ff,), jnp.float32,
                                         -1.0 / math.sqrt(emb), 1.0 / math.sqrt(emb))
        lp["ff2_A"] = xavier_uniform(next(keys), (n, n, n))
        lp["ff2_S"] = xavier_uniform(next(keys), (n, emb // n, ff // n))
        lp["ff2_b"] = jax.random.uniform(next(keys), (emb,), jnp.float32,
                                         -1.0 / math.sqrt(ff), 1.0 / math.sqrt(ff))
        lp["ln1_g"] = jnp.ones((emb,), jnp.float32)
        lp["ln1_b"] = jnp.zeros((emb,), jnp.float32)
        lp["ln2_g"] = jnp.ones((emb,), jnp.float32)
        lp["ln2_b"] = jnp.zeros((emb,), jnp.float32)
        layers.append(lp)
    p["layers"] = layers
    p["pe"] = positional_encoding_table(maxlen, emb)
    return p


# -------------------------------- forward ---------------------------------

def _dense_weights(params, nhead):
    """Build PHM dense weights once per forward, head-major, bf16, scale folded."""
    emb_table = phm_weight(params["emb_A"], params["emb_S"])      # (vocab, E)
    V, E = emb_table.shape
    Vp = ((V + 127) // 128) * 128                                  # lane-dense logits
    gen_w = phm_weight(params["gen_A"], params["gen_S"]).T         # (E, V)
    gen_w = jnp.pad(gen_w, ((0, 0), (0, Vp - V))).astype(jnp.bfloat16)
    gen_b = jnp.pad(params["gen_b"], (0, Vp - V))
    dw = {"emb_table": emb_table, "gen_w": gen_w, "gen_b": gen_b}

    H = nhead
    dh = E // H
    scale = 1.0 / math.sqrt(dh)

    layers = []
    for lp in params["layers"]:
        wq = phm_weight(lp["q_A"], lp["q_S"]).T * scale            # scale folded
        wk = phm_weight(lp["k_A"], lp["k_S"]).T
        wv = phm_weight(lp["v_A"], lp["v_S"]).T
        wo = phm_weight(lp["o_A"], lp["o_S"]).T                    # (E, E)
        F = lp["ff1_b"].shape[0]
        d = {
            # head-major (H, E, dh) so the attention BlockSpec selects whole heads
            "wq": wq.reshape(E, H, dh).transpose(1, 0, 2).astype(jnp.bfloat16),
            "wk": wk.reshape(E, H, dh).transpose(1, 0, 2).astype(jnp.bfloat16),
            "wv": wv.reshape(E, H, dh).transpose(1, 0, 2).astype(jnp.bfloat16),
            "bq": (lp["q_b"] * scale).reshape(H, 1, dh),
            "bk": lp["k_b"].reshape(H, 1, dh),
            "bv": lp["v_b"].reshape(H, 1, dh),
            "wo": wo.reshape(H, dh, E).astype(jnp.bfloat16),       # (H, dh, E)
            "bo": lp["o_b"].reshape(1, E),
            "w1": phm_weight(lp["ff1_A"], lp["ff1_S"]).T.astype(jnp.bfloat16),
            "b1": lp["ff1_b"].reshape(1, F),
            "w2": phm_weight(lp["ff2_A"], lp["ff2_S"]).T.astype(jnp.bfloat16),
            "b2": lp["ff2_b"].reshape(1, E),
            "ln1_g": lp["ln1_g"].reshape(1, E), "ln1_b": lp["ln1_b"].reshape(1, E),
            "ln2_g": lp["ln2_g"].reshape(1, E), "ln2_b": lp["ln2_b"].reshape(1, E),
        }
        layers.append(d)
    dw["layers"] = layers
    return dw


def make_forward(*, nhead, emb, vocab):
    sqrt_e = math.sqrt(emb)

    @jax.jit
    def forward(src, params):
        """src: (S, B) int32 token ids -> logits (S, B, vocab)."""
        S, B = src.shape
        dw = _dense_weights(params, nhead)

        # Embedding gather + sqrt(E) scale + PE in XLA (fuses with the gather);
        # residual stream carried in bf16 through the layer stack.
        tok = jnp.take(dw["emb_table"], src.T, axis=0)             # (B, S, E)
        x = (tok * sqrt_e + params["pe"][:S][None]).astype(jnp.bfloat16)

        for d in dw["layers"]:
            # (1) pre-LN + MHA + out-proj + residual, grid (B, nhead)
            x = pallas_attn_layer(x, d["ln1_g"], d["ln1_b"],
                                  d["wq"], d["wk"], d["wv"],
                                  d["bq"], d["bk"], d["bv"],
                                  d["wo"], d["bo"])
            # (2) pre-LN + FFN (F-tiled) + residual
            x = pallas_ffn_layer(x, d["ln2_g"], d["ln2_b"],
                                 d["w1"], d["b1"], d["w2"], d["b2"])

        # generator projection (tiled, K-reduction accumulator, padded vocab)
        logits2d = pallas_linear(x.reshape(B * S, emb), dw["gen_w"], dw["gen_b"])
        logits2d = logits2d[:, :vocab]                             # drop lane padding
        return logits2d.reshape(B, S, vocab).transpose(1, 0, 2)    # (S, B, vocab)
    return forward


# --------------------------------- main ------------------------------------

if __name__ == "__main__":
    n = 4
    nhead = 4
    num_encoder_layers = 2
    emb_size = 32
    src_vocab_size = 16
    dim_feedforward = 64
    S, B = 8, 2

    key = jax.random.PRNGKey(0)
    k_param, k_src = jax.random.split(key)
    params = init_params(k_param, n=n, nhead=nhead, num_layers=num_encoder_layers,
                         emb=emb_size, vocab=src_vocab_size, ff=dim_feedforward)
    src = jax.random.randint(k_src, (S, B), 0, src_vocab_size, dtype=jnp.int32)

    forward = make_forward(nhead=nhead, emb=emb_size, vocab=src_vocab_size)
    logits = forward(src, params)
    jax.block_until_ready(logits)
    assert logits.shape == (S, B, src_vocab_size)
    assert bool(jnp.all(jnp.isfinite(logits)))
    print("KERNEL_OK")
</pallas_src>

<mosaic_0001>
module attributes {stable_mosaic.version = 11 : i64} {
  func.func @_attn_layer_kernel(%arg0: i32, %arg1: i32, %arg2: memref<1x8x32xbf16, #tpu.memory_space<vmem>>, %arg3: memref<1x32xf32, #tpu.memory_space<vmem>>, %arg4: memref<1x32xf32, #tpu.memory_space<vmem>>, %arg5: memref<1x32x8xbf16, #tpu.memory_space<vmem>>, %arg6: memref<1x32x8xbf16, #tpu.memory_space<vmem>>, %arg7: memref<1x32x8xbf16, #tpu.memory_space<vmem>>, %arg8: memref<1x1x8xf32, #tpu.memory_space<vmem>>, %arg9: memref<1x1x8xf32, #tpu.memory_space<vmem>>, %arg10: memref<1x1x8xf32, #tpu.memory_space<vmem>>, %arg11: memref<1x8x32xbf16, #tpu.memory_space<vmem>>, %arg12: memref<1x32xf32, #tpu.memory_space<vmem>>, %arg13: memref<1x8x32xbf16, #tpu.memory_space<vmem>>, %arg14: memref<8x32xbf16, #tpu.memory_space<vmem>>, %arg15: memref<8x8xf32, #tpu.memory_space<vmem>>, %arg16: memref<8x32xf32, #tpu.memory_space<vmem>>) attributes {dimension_semantics = [#tpu.dimension_semantics<parallel>, #tpu.dimension_semantics<arbitrary>], iteration_bounds = array<i64: 2, 4>, scalar_prefetch = 0 : i64, scratch_operands = 3 : i64, tpu.core_type = #tpu.core_type<tc>, window_params = [{transform_indices = @transform_0, window_bounds = array<i64: 1, 8, 32>}, {pipeline_mode = #tpu.pipeline_mode<synchronous>, transform_indices = @transform_1, window_bounds = array<i64: 1, 32>}, {pipeline_mode = #tpu.pipeline_mode<synchronous>, transform_indices = @transform_2, window_bounds = array<i64: 1, 32>}, {transform_indices = @transform_3, window_bounds = array<i64: 1, 32, 8>}, {transform_indices = @transform_4, window_bounds = array<i64: 1, 32, 8>}, {transform_indices = @transform_5, window_bounds = array<i64: 1, 32, 8>}, {transform_indices = @transform_6, window_bounds = array<i64: 1, 1, 8>}, {transform_indices = @transform_7, window_bounds = array<i64: 1, 1, 8>}, {transform_indices = @transform_8, window_bounds = array<i64: 1, 1, 8>}, {transform_indices = @transform_9, window_bounds = array<i64: 1, 8, 32>}, {pipeline_mode = #tpu.pipeline_mode<synchronous>, transform_indices = @transform_10, window_bounds = array<i64: 1, 32>}, {transform_indices = @transform_11, window_bounds = array<i64: 1, 8, 32>}]} {
    %c0_i32 = arith.constant 0 : i32
    %0 = arith.cmpi eq, %arg1, %c0_i32 : i32
    %1 = arith.extui %0 : i1 to i32
    %c0_i32_0 = arith.constant 0 : i32
    %2 = arith.cmpi ne, %1, %c0_i32_0 : i32
    scf.if %2 {
      %c0_37 = arith.constant 0 : index
      %c0_38 = arith.constant 0 : index
      %c0_39 = arith.constant 0 : index
      %53 = vector.load %arg2[%c0_37, %c0_38, %c0_39] : memref<1x8x32xbf16, #tpu.memory_space<vmem>>, vector<1x8x32xbf16>
      %54 = vector.shape_cast %53 : vector<1x8x32xbf16> to vector<8x32xbf16>
      %55 = arith.extf %54 : vector<8x32xbf16> to vector<8x32xf32>
      %cst_40 = arith.constant dense<0.000000e+00> : vector<8xf32>
      %56 = vector.multi_reduction <add>, %55, %cst_40 [1] : vector<8x32xf32> to vector<8xf32>
      %57 = vector.shape_cast %56 : vector<8xf32> to vector<8x1xf32>
      %cst_41 = arith.constant 3.200000e+01 : f32
      %58 = vector.broadcast %cst_41 : f32 to vector<8x1xf32>
      %59 = arith.divf %57, %58 : vector<8x1xf32>
      %60 = vector.broadcast %59 : vector<8x1xf32> to vector<8x32xf32>
      %61 = arith.subf %55, %60 : vector<8x32xf32>
      %62 = arith.mulf %61, %61 : vector<8x32xf32>
      %cst_42 = arith.constant dense<0.000000e+00> : vector<8xf32>
      %63 = vector.multi_reduction <add>, %62, %cst_42 [1] : vector<8x32xf32> to vector<8xf32>
      %64 = vector.shape_cast %63 : vector<8xf32> to vector<8x1xf32>
      %cst_43 = arith.constant 3.200000e+01 : f32
      %65 = vector.broadcast %cst_43 : f32 to vector<8x1xf32>
      %66 = arith.divf %64, %65 : vector<8x1xf32>
      %67 = vector.broadcast %59 : vector<8x1xf32> to vector<8x32xf32>
      %68 = arith.subf %55, %67 : vector<8x32xf32>
      %cst_44 = arith.constant 9.99999974E-6 : f32
      %69 = vector.broadcast %cst_44 : f32 to vector<8x1xf32>
      %70 = arith.addf %66, %69 : vector<8x1xf32>
      %71 = math.rsqrt %70 : vector<8x1xf32>
      %72 = vector.broadcast %71 : vector<8x1xf32> to vector<8x32xf32>
      %73 = arith.mulf %68, %72 : vector<8x32xf32>
      %c0_45 = arith.constant 0 : index
      %c0_46 = arith.constant 0 : index
      %74 = vector.load %arg3[%c0_45, %c0_46] : memref<1x32xf32, #tpu.memory_space<vmem>>, vector<1x32xf32>
      %75 = vector.broadcast %74 : vector<1x32xf32> to vector<8x32xf32>
      %76 = arith.mulf %73, %75 : vector<8x32xf32>
      %c0_47 = arith.constant 0 : index
      %c0_48 = arith.constant 0 : index
      %77 = vector.load %arg4[%c0_47, %c0_48] : memref<1x32xf32, #tpu.memory_space<vmem>>, vector<1x32xf32>
      %78 = vector.broadcast %77 : vector<1x32xf32> to vector<8x32xf32>
      %79 = arith.addf %76, %78 : vector<8x32xf32>
      %80 = arith.truncf %79 : vector<8x32xf32> to vector<8x32xbf16>
      %c0_49 = arith.constant 0 : index
      %c0_50 = arith.constant 0 : index
      %81 = vector.load %arg14[%c0_49, %c0_50] : memref<8x32xbf16, #tpu.memory_space<vmem>>, vector<8x32xbf16>
      tpu.vector_store %arg14[%c0_49, %c0_50], %80 {strides = array<i32>} : memref<8x32xbf16, #tpu.memory_space<vmem>>, vector<8x32xbf16>,
      %82 = tpu.iota {dimensions = array<i32: 0>} : vector<8x8xi32>
      %83 = tpu.iota {dimensions = array<i32: 1>} : vector<8x8xi32>
      %84 = arith.cmpi sge, %82, %83 : vector<8x8xi32>
      %cst_51 = arith.constant 0.000000e+00 : f32
      %cst_52 = arith.constant -1.000000e+30 : f32
      %85 = vector.broadcast %cst_51 : f32 to vector<8x8xf32>
      %86 = vector.broadcast %cst_52 : f32 to vector<8x8xf32>
      %87 = arith.select %84, %85, %86 : vector<8x8xi1>, vector<8x8xf32>
      %c0_53 = arith.constant 0 : index
      %c0_54 = arith.constant 0 : index
      %88 = vector.load %arg15[%c0_53, %c0_54] : memref<8x8xf32, #tpu.memory_space<vmem>>, vector<8x8xf32>
      tpu.vector_store %arg15[%c0_53, %c0_54], %87 {strides = array<i32>} : memref<8x8xf32, #tpu.memory_space<vmem>>, vector<8x8xf32>,
      %cst_55 = arith.constant 0.000000e+00 : f32
      %89 = vector.broadcast %cst_55 : f32 to vector<8x32xf32>
      %c0_56 = arith.constant 0 : index
      %c0_57 = arith.constant 0 : index
      %90 = vector.load %arg16[%c0_56, %c0_57] : memref<8x32xf32, #tpu.memory_space<vmem>>, vector<8x32xf32>
      tpu.vector_store %arg16[%c0_56, %c0_57], %89 {strides = array<i32>} : memref<8x32xf32, #tpu.memory_space<vmem>>, vector<8x32xf32>,
    } else {
    }
    %c0 = arith.constant 0 : index
    %c0_1 = arith.constant 0 : index
    %3 = vector.load %arg14[%c0, %c0_1] : memref<8x32xbf16, #tpu.memory_space<vmem>>, vector<8x32xbf16>
    %c0_2 = arith.constant 0 : index
    %c0_3 = arith.constant 0 : index
    %c0_4 = arith.constant 0 : index
    %4 = vector.load %arg5[%c0_2, %c0_3, %c0_4] : memref<1x32x8xbf16, #tpu.memory_space<vmem>>, vector<1x32x8xbf16>
    %5 = vector.shape_cast %4 : vector<1x32x8xbf16> to vector<32x8xbf16>
    %cst = arith.constant dense<0.000000e+00> : vector<8x8xf32>
    %6 = tpu.matmul %3, %5, %cst {dimension_numbers = #tpu.dot_dimension_numbers<[1], [0], [0], [1], [0, 0, 1, 1], [], []>} : vector<8x32xbf16>, vector<32x8xbf16>, vector<8x8xf32> -> vector<8x8xf32>
    %c0_5 = arith.constant 0 : index
    %c0_6 = arith.constant 0 : index
    %c0_7 = arith.constant 0 : index
    %7 = vector.load %arg8[%c0_5, %c0_6, %c0_7] : memref<1x1x8xf32, #tpu.memory_space<vmem>>, vector<1x1x8xf32>
    %8 = vector.shape_cast %7 : vector<1x1x8xf32> to vector<1x8xf32>
    %9 = vector.broadcast %8 : vector<1x8xf32> to vector<8x8xf32>
    %10 = arith.addf %6, %9 : vector<8x8xf32>
    %c0_8 = arith.constant 0 : index
    %c0_9 = arith.constant 0 : index
    %c0_10 = arith.constant 0 : index
    %11 = vector.load %arg6[%c0_8, %c0_9, %c0_10] : memref<1x32x8xbf16, #tpu.memory_space<vmem>>, vector<1x32x8xbf16>
    %12 = vector.shape_cast %11 : vector<1x32x8xbf16> to vector<32x8xbf16>
    %cst_11 = arith.constant dense<0.000000e+00> : vector<8x8xf32>
    %13 = tpu.matmul %3, %12, %cst_11 {dimension_numbers = #tpu.dot_dimension_numbers<[1], [0], [0], [1], [0, 0, 1, 1], [], []>} : vector<8x32xbf16>, vector<32x8xbf16>, vector<8x8xf32> -> vector<8x8xf32>
    %c0_12 = arith.constant 0 : index
    %c0_13 = arith.constant 0 : index
    %c0_14 = arith.constant 0 : index
    %14 = vector.load %arg9[%c0_12, %c0_13, %c0_14] : memref<1x1x8xf32, #tpu.memory_space<vmem>>, vector<1x1x8xf32>
    %15 = vector.shape_cast %14 : vector<1x1x8xf32> to vector<1x8xf32>
    %16 = vector.broadcast %15 : vector<1x8xf32> to vector<8x8xf32>
    %17 = arith.addf %13, %16 : vector<8x8xf32>
    %c0_15 = arith.constant 0 : index
    %c0_16 = arith.constant 0 : index
    %c0_17 = arith.constant 0 : index
    %18 = vector.load %arg7[%c0_15, %c0_16, %c0_17] : memref<1x32x8xbf16, #tpu.memory_space<vmem>>, vector<1x32x8xbf16>
    %19 = vector.shape_cast %18 : vector<1x32x8xbf16> to vector<32x8xbf16>
    %cst_18 = arith.constant dense<0.000000e+00> : vector<8x8xf32>
    %20 = tpu.matmul %3, %19, %cst_18 {dimension_numbers = #tpu.dot_dimension_numbers<[1], [0], [0], [1], [0, 0, 1, 1], [], []>} : vector<8x32xbf16>, vector<32x8xbf16>, vector<8x8xf32> -> vector<8x8xf32>
    %c0_19 = arith.constant 0 : index
    %c0_20 = arith.constant 0 : index
    %c0_21 = arith.constant 0 : index
    %21 = vector.load %arg10[%c0_19, %c0_20, %c0_21] : memref<1x1x8xf32, #tpu.memory_space<vmem>>, vector<1x1x8xf32>
    %22 = vector.shape_cast %21 : vector<1x1x8xf32> to vector<1x8xf32>
    %23 = vector.broadcast %22 : vector<1x8xf32> to vector<8x8xf32>
    %24 = arith.addf %20, %23 : vector<8x8xf32>
    %25 = arith.truncf %10 : vector<8x8xf32> to vector<8x8xbf16>
    %26 = arith.truncf %17 : vector<8x8xf32> to vector<8x8xbf16>
    %cst_22 = arith.constant dense<0.000000e+00> : vector<8x8xf32>
    %27 = tpu.matmul %25, %26, %cst_22 {dimension_numbers = #tpu.dot_dimension_numbers<[1], [1], [0], [0], [0, 0, 1, 0], [], []>} : vector<8x8xbf16>, vector<8x8xbf16>, vector<8x8xf32> -> vector<8x8xf32>
    %c0_23 = arith.constant 0 : index
    %c0_24 = arith.constant 0 : index
    %28 = vector.load %arg15[%c0_23, %c0_24] : memref<8x8xf32, #tpu.memory_space<vmem>>, vector<8x8xf32>
    %29 = arith.addf %27, %28 : vector<8x8xf32>
    %cst_25 = arith.constant dense<0xFF800000> : vector<8xf32>
    %30 = vector.multi_reduction <maximumf>, %29, %cst_25 [1] : vector<8x8xf32> to vector<8xf32>
    %31 = vector.shape_cast %30 : vector<8xf32> to vector<8x1xf32>
    %32 = vector.broadcast %31 : vector<8x1xf32> to vector<8x8xf32>
    %33 = arith.subf %29, %32 : vector<8x8xf32>
    %34 = math.exp %33 : vector<8x8xf32>
    %cst_26 = arith.constant dense<0.000000e+00> : vector<8xf32>
    %35 = vector.multi_reduction <add>, %34, %cst_26 [1] : vector<8x8xf32> to vector<8xf32>
    %36 = vector.shape_cast %35 : vector<8xf32> to vector<8x1xf32>
    %37 = arith.truncf %34 : vector<8x8xf32> to vector<8x8xbf16>
    %38 = arith.truncf %24 : vector<8x8xf32> to vector<8x8xbf16>
    %cst_27 = arith.constant dense<0.000000e+00> : vector<8x8xf32>
    %39 = tpu.matmul %37, %38, %cst_27 {dimension_numbers = #tpu.dot_dimension_numbers<[1], [0], [0], [1], [0, 0, 1, 1], [], []>} : vector<8x8xbf16>, vector<8x8xbf16>, vector<8x8xf32> -> vector<8x8xf32>
    %40 = tpu.reciprocal %36 {approx = true} : vector<8x1xf32> -> vector<8x1xf32>
    %41 = vector.broadcast %40 : vector<8x1xf32> to vector<8x8xf32>
    %42 = arith.mulf %39, %41 : vector<8x8xf32>
    %c0_28 = arith.constant 0 : index
    %c0_29 = arith.constant 0 : index
    %43 = vector.load %arg16[%c0_28, %c0_29] : memref<8x32xf32, #tpu.memory_space<vmem>>, vector<8x32xf32>
    %44 = arith.truncf %42 : vector<8x8xf32> to vector<8x8xbf16>
    %c0_30 = arith.constant 0 : index
    %c0_31 = arith.constant 0 : index
    %c0_32 = arith.constant 0 : index
    %45 = vector.load %arg11[%c0_30, %c0_31, %c0_32] : memref<1x8x32xbf16, #tpu.memory_space<vmem>>, vector<1x8x32xbf16>
    %46 = vector.shape_cast %45 : vector<1x8x32xbf16> to vector<8x32xbf16>
    %cst_33 = arith.constant dense<0.000000e+00> : vector<8x32xf32>
    %47 = tpu.matmul %44, %46, %cst_33 {dimension_numbers = #tpu.dot_dimension_numbers<[1], [0], [0], [1], [0, 0, 1, 1], [], []>} : vector<8x8xbf16>, vector<8x32xbf16>, vector<8x32xf32> -> vector<8x32xf32>
    %48 = arith.addf %43, %47 : vector<8x32xf32>
    %c0_34 = arith.constant 0 : index
    %c0_35 = arith.constant 0 : index
    %49 = vector.load %arg16[%c0_34, %c0_35] : memref<8x32xf32, #tpu.memory_space<vmem>>, vector<8x32xf32>
    tpu.vector_store %arg16[%c0_34, %c0_35], %48 {strides = array<i32>} : memref<8x32xf32, #tpu.memory_space<vmem>>, vector<8x32xf32>,
    %c3_i32 = arith.constant 3 : i32
    %50 = arith.cmpi eq, %arg1, %c3_i32 : i32
    %51 = arith.extui %50 : i1 to i32
    %c0_i32_36 = arith.constant 0 : i32
    %52 = arith.cmpi ne, %51, %c0_i32_36 : i32
    scf.if %52 {
      %c0_37 = arith.constant 0 : index
      %c0_38 = arith.constant 0 : index
      %c0_39 = arith.constant 0 : index
      %53 = vector.load %arg2[%c0_37, %c0_38, %c0_39] : memref<1x8x32xbf16, #tpu.memory_space<vmem>>, vector<1x8x32xbf16>
      %54 = vector.shape_cast %53 : vector<1x8x32xbf16> to vector<8x32xbf16>
      %55 = arith.extf %54 : vector<8x32xbf16> to vector<8x32xf32>
      %c0_40 = arith.constant 0 : index
      %c0_41 = arith.constant 0 : index
      %56 = vector.load %arg16[%c0_40, %c0_41] : memref<8x32xf32, #tpu.memory_space<vmem>>, vector<8x32xf32>
      %57 = arith.addf %55, %56 : vector<8x32xf32>
      %c0_42 = arith.constant 0 : index
      %c0_43 = arith.constant 0 : index
      %58 = vector.load %arg12[%c0_42, %c0_43] : memref<1x32xf32, #tpu.memory_space<vmem>>, vector<1x32xf32>
      %59 = vector.broadcast %58 : vector<1x32xf32> to vector<8x32xf32>
      %60 = arith.addf %57, %59 : vector<8x32xf32>
      %61 = arith.truncf %60 : vector<8x32xf32> to vector<8x32xbf16>
      %c0_44 = arith.constant 0 : index
      %c0_45 = arith.constant 0 : index
      %c0_46 = arith.constant 0 : index
      %62 = vector.load %arg13[%c0_44, %c0_45, %c0_46] : memref<1x8x32xbf16, #tpu.memory_space<vmem>>, vector<1x8x32xbf16>
      %63 = vector.shape_cast %62 : vector<1x8x32xbf16> to vector<8x32xbf16>
      %64 = vector.shape_cast %61 : vector<8x32xbf16> to vector<1x8x32xbf16>
      tpu.vector_store %arg13[%c0_44, %c0_45, %c0_46], %64 {strides = array<i32>} : memref<1x8x32xbf16, #tpu.memory_space<vmem>>, vector<1x8x32xbf16>,
    } else {
    }
    return
  }
  func.func @transform_0(%arg0: i32, %arg1: i32) -> (i32, i32, i32) {
    %c0_i32 = arith.constant 0 : i32
    %c0_i32_0 = arith.constant 0 : i32
    %c0_i32_1 = arith.constant 0 : i32
    return %arg0, %c0_i32, %c0_i32_0 : i32, i32, i32
  }
  func.func @transform_1(%arg0: i32, %arg1: i32) -> (i32, i32) {
    %c0_i32 = arith.constant 0 : i32
    %c0_i32_0 = arith.constant 0 : i32
    %c0_i32_1 = arith.constant 0 : i32
    return %c0_i32, %c0_i32_0 : i32, i32
  }
  func.func @transform_2(%arg0: i32, %arg1: i32) -> (i32, i32) {
    %c0_i32 = arith.constant 0 : i32
    %c0_i32_0 = arith.constant 0 : i32
    %c0_i32_1 = arith.constant 0 : i32
    return %c0_i32, %c0_i32_0 : i32, i32
  }
  func.func @transform_3(%arg0: i32, %arg1: i32) -> (i32, i32, i32) {
    %c0_i32 = arith.constant 0 : i32
    %c0_i32_0 = arith.constant 0 : i32
    %c0_i32_1 = arith.constant 0 : i32
    return %arg1, %c0_i32, %c0_i32_0 : i32, i32, i32
  }
  func.func @transform_4(%arg0: i32, %arg1: i32) -> (i32, i32, i32) {
    %c0_i32 = arith.constant 0 : i32
    %c0_i32_0 = arith.constant 0 : i32
    %c0_i32_1 = arith.constant 0 : i32
    return %arg1, %c0_i32, %c0_i32_0 : i32, i32, i32
  }
  func.func @transform_5(%arg0: i32, %arg1: i32) -> (i32, i32, i32) {
    %c0_i32 = arith.constant 0 : i32
    %c0_i32_0 = arith.constant 0 : i32
    %c0_i32_1 = arith.constant 0 : i32
    return %arg1, %c0_i32, %c0_i32_0 : i32, i32, i32
  }
  func.func @transform_6(%arg0: i32, %arg1: i32) -> (i32, i32, i32) {
    %c0_i32 = arith.constant 0 : i32
    %c0_i32_0 = arith.constant 0 : i32
    %c0_i32_1 = arith.constant 0 : i32
    return %arg1, %c0_i32, %c0_i32_0 : i32, i32, i32
  }
  func.func @transform_7(%arg0: i32, %arg1: i32) -> (i32, i32, i32) {
    %c0_i32 = arith.constant 0 : i32
    %c0_i32_0 = arith.constant 0 : i32
    %c0_i32_1 = arith.constant 0 : i32
    return %arg1, %c0_i32, %c0_i32_0 : i32, i32, i32
  }
  func.func @transform_8(%arg0: i32, %arg1: i32) -> (i32, i32, i32) {
    %c0_i32 = arith.constant 0 : i32
    %c0_i32_0 = arith.constant 0 : i32
    %c0_i32_1 = arith.constant 0 : i32
    return %arg1, %c0_i32, %c0_i32_0 : i32, i32, i32
  }
  func.func @transform_9(%arg0: i32, %arg1: i32) -> (i32, i32, i32) {
    %c0_i32 = arith.constant 0 : i32
    %c0_i32_0 = arith.constant 0 : i32
    %c0_i32_1 = arith.constant 0 : i32
    return %arg1, %c0_i32, %c0_i32_0 : i32, i32, i32
  }
  func.func @transform_10(%arg0: i32, %arg1: i32) -> (i32, i32) {
    %c0_i32 = arith.constant 0 : i32
    %c0_i32_0 = arith.constant 0 : i32
    %c0_i32_1 = arith.constant 0 : i32
    return %c0_i32, %c0_i32_0 : i32, i32
  }
  func.func @transform_11(%arg0: i32, %arg1: i32) -> (i32, i32, i32) {
    %c0_i32 = arith.constant 0 : i32
    %c0_i32_0 = arith.constant 0 : i32
    %c0_i32_1 = arith.constant 0 : i32
    return %arg0, %c0_i32, %c0_i32_0 : i32, i32, i32
  }
}

module attributes {stable_mosaic.version = 11 : i64} {
  func.func @_ffn_layer_kernel(%arg0: i32, %arg1: i32, %arg2: i32, %arg3: memref<1x8x32xbf16, #tpu.memory_space<vmem>>, %arg4: memref<1x32xf32, #tpu.memory_space<vmem>>, %arg5: memref<1x32xf32, #tpu.memory_space<vmem>>, %arg6: memref<32x64xbf16, #tpu.memory_space<vmem>>, %arg7: memref<1x64xf32, #tpu.memory_space<vmem>>, %arg8: memref<64x32xbf16, #tpu.memory_space<vmem>>, %arg9: memref<1x32xf32, #tpu.memory_space<vmem>>, %arg10: memref<1x8x32xbf16, #tpu.memory_space<vmem>>, %arg11: memref<8x32xbf16, #tpu.memory_space<vmem>>, %arg12: memref<8x32xf32, #tpu.memory_space<vmem>>) attributes {dimension_semantics = [#tpu.dimension_semantics<parallel>, #tpu.dimension_semantics<parallel>, #tpu.dimension_semantics<arbitrary>], iteration_bounds = array<i64: 2, 1, 1>, scalar_prefetch = 0 : i64, scratch_operands = 2 : i64, tpu.core_type = #tpu.core_type<tc>, window_params = [{transform_indices = @transform_0, window_bounds = array<i64: 1, 8, 32>}, {pipeline_mode = #tpu.pipeline_mode<synchronous>, transform_indices = @transform_1, window_bounds = array<i64: 1, 32>}, {pipeline_mode = #tpu.pipeline_mode<synchronous>, transform_indices = @transform_2, window_bounds = array<i64: 1, 32>}, {transform_indices = @transform_3, window_bounds = array<i64: 32, 64>}, {transform_indices = @transform_4, window_bounds = array<i64: 1, 64>}, {transform_indices = @transform_5, window_bounds = array<i64: 64, 32>}, {pipeline_mode = #tpu.pipeline_mode<synchronous>, transform_indices = @transform_6, window_bounds = array<i64: 1, 32>}, {transform_indices = @transform_7, window_bounds = array<i64: 1, 8, 32>}]} {
    %c0_i32 = arith.constant 0 : i32
    %0 = arith.cmpi eq, %arg2, %c0_i32 : i32
    %1 = arith.extui %0 : i1 to i32
    %c0_i32_0 = arith.constant 0 : i32
    %2 = arith.cmpi ne, %1, %c0_i32_0 : i32
    scf.if %2 {
      %c0_16 = arith.constant 0 : index
      %c0_17 = arith.constant 0 : index
      %c0_18 = arith.constant 0 : index
      %20 = vector.load %arg3[%c0_16, %c0_17, %c0_18] : memref<1x8x32xbf16, #tpu.memory_space<vmem>>, vector<1x8x32xbf16>
      %21 = vector.shape_cast %20 : vector<1x8x32xbf16> to vector<8x32xbf16>
      %22 = arith.extf %21 : vector<8x32xbf16> to vector<8x32xf32>
      %cst_19 = arith.constant dense<0.000000e+00> : vector<8xf32>
      %23 = vector.multi_reduction <add>, %22, %cst_19 [1] : vector<8x32xf32> to vector<8xf32>
      %24 = vector.shape_cast %23 : vector<8xf32> to vector<8x1xf32>
      %cst_20 = arith.constant 3.200000e+01 : f32
      %25 = vector.broadcast %cst_20 : f32 to vector<8x1xf32>
      %26 = arith.divf %24, %25 : vector<8x1xf32>
      %27 = vector.broadcast %26 : vector<8x1xf32> to vector<8x32xf32>
      %28 = arith.subf %22, %27 : vector<8x32xf32>
      %29 = arith.mulf %28, %28 : vector<8x32xf32>
      %cst_21 = arith.constant dense<0.000000e+00> : vector<8xf32>
      %30 = vector.multi_reduction <add>, %29, %cst_21 [1] : vector<8x32xf32> to vector<8xf32>
      %31 = vector.shape_cast %30 : vector<8xf32> to vector<8x1xf32>
      %cst_22 = arith.constant 3.200000e+01 : f32
      %32 = vector.broadcast %cst_22 : f32 to vector<8x1xf32>
      %33 = arith.divf %31, %32 : vector<8x1xf32>
      %34 = vector.broadcast %26 : vector<8x1xf32> to vector<8x32xf32>
      %35 = arith.subf %22, %34 : vector<8x32xf32>
      %cst_23 = arith.constant 9.99999974E-6 : f32
      %36 = vector.broadcast %cst_23 : f32 to vector<8x1xf32>
      %37 = arith.addf %33, %36 : vector<8x1xf32>
      %38 = math.rsqrt %37 : vector<8x1xf32>
      %39 = vector.broadcast %38 : vector<8x1xf32> to vector<8x32xf32>
      %40 = arith.mulf %35, %39 : vector<8x32xf32>
      %c0_24 = arith.constant 0 : index
      %c0_25 = arith.constant 0 : index
      %41 = vector.load %arg4[%c0_24, %c0_25] : memref<1x32xf32, #tpu.memory_space<vmem>>, vector<1x32xf32>
      %42 = vector.broadcast %41 : vector<1x32xf32> to vector<8x32xf32>
      %43 = arith.mulf %40, %42 : vector<8x32xf32>
      %c0_26 = arith.constant 0 : index
      %c0_27 = arith.constant 0 : index
      %44 = vector.load %arg5[%c0_26, %c0_27] : memref<1x32xf32, #tpu.memory_space<vmem>>, vector<1x32xf32>
      %45 = vector.broadcast %44 : vector<1x32xf32> to vector<8x32xf32>
      %46 = arith.addf %43, %45 : vector<8x32xf32>
      %47 = arith.truncf %46 : vector<8x32xf32> to vector<8x32xbf16>
      %c0_28 = arith.constant 0 : index
      %c0_29 = arith.constant 0 : index
      %48 = vector.load %arg11[%c0_28, %c0_29] : memref<8x32xbf16, #tpu.memory_space<vmem>>, vector<8x32xbf16>
      tpu.vector_store %arg11[%c0_28, %c0_29], %47 {strides = array<i32>} : memref<8x32xbf16, #tpu.memory_space<vmem>>, vector<8x32xbf16>,
      %cst_30 = arith.constant 0.000000e+00 : f32
      %49 = vector.broadcast %cst_30 : f32 to vector<8x32xf32>
      %c0_31 = arith.constant 0 : index
      %c0_32 = arith.constant 0 : index
      %50 = vector.load %arg12[%c0_31, %c0_32] : memref<8x32xf32, #tpu.memory_space<vmem>>, vector<8x32xf32>
      tpu.vector_store %arg12[%c0_31, %c0_32], %49 {strides = array<i32>} : memref<8x32xf32, #tpu.memory_space<vmem>>, vector<8x32xf32>,
    } else {
    }
    %c0 = arith.constant 0 : index
    %c0_1 = arith.constant 0 : index
    %3 = vector.load %arg11[%c0, %c0_1] : memref<8x32xbf16, #tpu.memory_space<vmem>>, vector<8x32xbf16>
    %c0_2 = arith.constant 0 : index
    %c0_3 = arith.constant 0 : index
    %4 = vector.load %arg6[%c0_2, %c0_3] : memref<32x64xbf16, #tpu.memory_space<vmem>>, vector<32x64xbf16>
    %cst = arith.constant dense<0.000000e+00> : vector<8x64xf32>
    %5 = tpu.matmul %3, %4, %cst {dimension_numbers = #tpu.dot_dimension_numbers<[1], [0], [0], [1], [0, 0, 1, 1], [], []>} : vector<8x32xbf16>, vector<32x64xbf16>, vector<8x64xf32> -> vector<8x64xf32>
    %c0_4 = arith.constant 0 : index
    %c0_5 = arith.constant 0 : index
    %6 = vector.load %arg7[%c0_4, %c0_5] : memref<1x64xf32, #tpu.memory_space<vmem>>, vector<1x64xf32>
    %7 = vector.broadcast %6 : vector<1x64xf32> to vector<8x64xf32>
    %8 = arith.addf %5, %7 : vector<8x64xf32>
    %cst_6 = arith.constant 0.000000e+00 : f32
    %9 = vector.broadcast %cst_6 : f32 to vector<8x64xf32>
    %10 = arith.maximumf %8, %9 : vector<8x64xf32>
    %c0_7 = arith.constant 0 : index
    %c0_8 = arith.constant 0 : index
    %11 = vector.load %arg12[%c0_7, %c0_8] : memref<8x32xf32, #tpu.memory_space<vmem>>, vector<8x32xf32>
    %12 = arith.truncf %10 : vector<8x64xf32> to vector<8x64xbf16>
    %c0_9 = arith.constant 0 : index
    %c0_10 = arith.constant 0 : index
    %13 = vector.load %arg8[%c0_9, %c0_10] : memref<64x32xbf16, #tpu.memory_space<vmem>>, vector<64x32xbf16>
    %cst_11 = arith.constant dense<0.000000e+00> : vector<8x32xf32>
    %14 = tpu.matmul %12, %13, %cst_11 {dimension_numbers = #tpu.dot_dimension_numbers<[1], [0], [0], [1], [0, 0, 1, 1], [], []>} : vector<8x64xbf16>, vector<64x32xbf16>, vector<8x32xf32> -> vector<8x32xf32>
    %15 = arith.addf %11, %14 : vector<8x32xf32>
    %c0_12 = arith.constant 0 : index
    %c0_13 = arith.constant 0 : index
    %16 = vector.load %arg12[%c0_12, %c0_13] : memref<8x32xf32, #tpu.memory_space<vmem>>, vector<8x32xf32>
    tpu.vector_store %arg12[%c0_12, %c0_13], %15 {strides = array<i32>} : memref<8x32xf32, #tpu.memory_space<vmem>>, vector<8x32xf32>,
    %c0_i32_14 = arith.constant 0 : i32
    %17 = arith.cmpi eq, %arg2, %c0_i32_14 : i32
    %18 = arith.extui %17 : i1 to i32
    %c0_i32_15 = arith.constant 0 : i32
    %19 = arith.cmpi ne, %18, %c0_i32_15 : i32
    scf.if %19 {
      %c0_16 = arith.constant 0 : index
      %c0_17 = arith.constant 0 : index
      %c0_18 = arith.constant 0 : index
      %20 = vector.load %arg3[%c0_16, %c0_17, %c0_18] : memref<1x8x32xbf16, #tpu.memory_space<vmem>>, vector<1x8x32xbf16>
      %21 = vector.shape_cast %20 : vector<1x8x32xbf16> to vector<8x32xbf16>
      %22 = arith.extf %21 : vector<8x32xbf16> to vector<8x32xf32>
      %c0_19 = arith.constant 0 : index
      %c0_20 = arith.constant 0 : index
      %23 = vector.load %arg12[%c0_19, %c0_20] : memref<8x32xf32, #tpu.memory_space<vmem>>, vector<8x32xf32>
      %24 = arith.addf %22, %23 : vector<8x32xf32>
      %c0_21 = arith.constant 0 : index
      %c0_22 = arith.constant 0 : index
      %25 = vector.load %arg9[%c0_21, %c0_22] : memref<1x32xf32, #tpu.memory_space<vmem>>, vector<1x32xf32>
      %26 = vector.broadcast %25 : vector<1x32xf32> to vector<8x32xf32>
      %27 = arith.addf %24, %26 : vector<8x32xf32>
      %28 = arith.truncf %27 : vector<8x32xf32> to vector<8x32xbf16>
      %c0_23 = arith.constant 0 : index
      %c0_24 = arith.constant 0 : index
      %c0_25 = arith.constant 0 : index
      %29 = vector.load %arg10[%c0_23, %c0_24, %c0_25] : memref<1x8x32xbf16, #tpu.memory_space<vmem>>, vector<1x8x32xbf16>
      %30 = vector.shape_cast %29 : vector<1x8x32xbf16> to vector<8x32xbf16>
      %31 = vector.shape_cast %28 : vector<8x32xbf16> to vector<1x8x32xbf16>
      tpu.vector_store %arg10[%c0_23, %c0_24, %c0_25], %31 {strides = array<i32>} : memref<1x8x32xbf16, #tpu.memory_space<vmem>>, vector<1x8x32xbf16>,
    } else {
    }
    return
  }
  func.func @transform_0(%arg0: i32, %arg1: i32, %arg2: i32) -> (i32, i32, i32) {
    %c0_i32 = arith.constant 0 : i32
    %c0_i32_0 = arith.constant 0 : i32
    return %arg0, %arg1, %c0_i32 : i32, i32, i32
  }
  func.func @transform_1(%arg0: i32, %arg1: i32, %arg2: i32) -> (i32, i32) {
    %c0_i32 = arith.constant 0 : i32
    %c0_i32_0 = arith.constant 0 : i32
    %c0_i32_1 = arith.constant 0 : i32
    return %c0_i32, %c0_i32_0 : i32, i32
  }
  func.func @transform_2(%arg0: i32, %arg1: i32, %arg2: i32) -> (i32, i32) {
    %c0_i32 = arith.constant 0 : i32
    %c0_i32_0 = arith.constant 0 : i32
    %c0_i32_1 = arith.constant 0 : i32
    return %c0_i32, %c0_i32_0 : i32, i32
  }
  func.func @transform_3(%arg0: i32, %arg1: i32, %arg2: i32) -> (i32, i32) {
    %c0_i32 = arith.constant 0 : i32
    %c0_i32_0 = arith.constant 0 : i32
    return %c0_i32, %arg2 : i32, i32
  }
  func.func @transform_4(%arg0: i32, %arg1: i32, %arg2: i32) -> (i32, i32) {
    %c0_i32 = arith.constant 0 : i32
    %c0_i32_0 = arith.constant 0 : i32
    return %c0_i32, %arg2 : i32, i32
  }
  func.func @transform_5(%arg0: i32, %arg1: i32, %arg2: i32) -> (i32, i32) {
    %c0_i32 = arith.constant 0 : i32
    %c0_i32_0 = arith.constant 0 : i32
    return %arg2, %c0_i32 : i32, i32
  }
  func.func @transform_6(%arg0: i32, %arg1: i32, %arg2: i32) -> (i32, i32) {
    %c0_i32 = arith.constant 0 : i32
    %c0_i32_0 = arith.constant 0 : i32
    %c0_i32_1 = arith.constant 0 : i32
    return %c0_i32, %c0_i32_0 : i32, i32
  }
  func.func @transform_7(%arg0: i32, %arg1: i32, %arg2: i32) -> (i32, i32, i32) {
    %c0_i32 = arith.constant 0 : i32
    %c0_i32_0 = arith.constant 0 : i32
    return %arg0, %arg1, %c0_i32 : i32, i32, i32
  }
}

module attributes {stable_mosaic.version = 11 : i64} {
  func.func @_linear_kernel(%arg0: i32, %arg1: i32, %arg2: i32, %arg3: memref<16x32xbf16, #tpu.memory_space<vmem>>, %arg4: memref<32x128xbf16, #tpu.memory_space<vmem>>, %arg5: memref<1x128xf32, #tpu.memory_space<vmem>>, %arg6: memref<16x128xf32, #tpu.memory_space<vmem>>, %arg7: memref<16x128xf32, #tpu.memory_space<vmem>>) attributes {dimension_semantics = [#tpu.dimension_semantics<parallel>, #tpu.dimension_semantics<parallel>, #tpu.dimension_semantics<arbitrary>], iteration_bounds = array<i64: 1, 1, 1>, scalar_prefetch = 0 : i64, scratch_operands = 1 : i64, tpu.core_type = #tpu.core_type<tc>, window_params = [{transform_indices = @transform_0, window_bounds = array<i64: 16, 32>}, {transform_indices = @transform_1, window_bounds = array<i64: 32, 128>}, {transform_indices = @transform_2, window_bounds = array<i64: 1, 128>}, {transform_indices = @transform_3, window_bounds = array<i64: 16, 128>}]} {
    %c0_i32 = arith.constant 0 : i32
    %0 = arith.cmpi eq, %arg2, %c0_i32 : i32
    %1 = arith.extui %0 : i1 to i32
    %c0_i32_0 = arith.constant 0 : i32
    %2 = arith.cmpi ne, %1, %c0_i32_0 : i32
    scf.if %2 {
      %cst_10 = arith.constant 0.000000e+00 : f32
      %12 = vector.broadcast %cst_10 : f32 to vector<16x128xf32>
      %c0_11 = arith.constant 0 : index
      %c0_12 = arith.constant 0 : index
      %13 = vector.load %arg7[%c0_11, %c0_12] : memref<16x128xf32, #tpu.memory_space<vmem>>, vector<16x128xf32>
      tpu.vector_store %arg7[%c0_11, %c0_12], %12 {strides = array<i32>} : memref<16x128xf32, #tpu.memory_space<vmem>>, vector<16x128xf32>,
    } else {
    }
    %c0 = arith.constant 0 : index
    %c0_1 = arith.constant 0 : index
    %3 = vector.load %arg7[%c0, %c0_1] : memref<16x128xf32, #tpu.memory_space<vmem>>, vector<16x128xf32>
    %c0_2 = arith.constant 0 : index
    %c0_3 = arith.constant 0 : index
    %4 = vector.load %arg3[%c0_2, %c0_3] : memref<16x32xbf16, #tpu.memory_space<vmem>>, vector<16x32xbf16>
    %c0_4 = arith.constant 0 : index
    %c0_5 = arith.constant 0 : index
    %5 = vector.load %arg4[%c0_4, %c0_5] : memref<32x128xbf16, #tpu.memory_space<vmem>>, vector<32x128xbf16>
    %cst = arith.constant dense<0.000000e+00> : vector<16x128xf32>
    %6 = tpu.matmul %4, %5, %cst {dimension_numbers = #tpu.dot_dimension_numbers<[1], [0], [0], [1], [0, 0, 1, 1], [], []>} : vector<16x32xbf16>, vector<32x128xbf16>, vector<16x128xf32> -> vector<16x128xf32>
    %7 = arith.addf %3, %6 : vector<16x128xf32>
    %c0_6 = arith.constant 0 : index
    %c0_7 = arith.constant 0 : index
    %8 = vector.load %arg7[%c0_6, %c0_7] : memref<16x128xf32, #tpu.memory_space<vmem>>, vector<16x128xf32>
    tpu.vector_store %arg7[%c0_6, %c0_7], %7 {strides = array<i32>} : memref<16x128xf32, #tpu.memory_space<vmem>>, vector<16x128xf32>,
    %c0_i32_8 = arith.constant 0 : i32
    %9 = arith.cmpi eq, %arg2, %c0_i32_8 : i32
    %10 = arith.extui %9 : i1 to i32
    %c0_i32_9 = arith.constant 0 : i32
    %11 = arith.cmpi ne, %10, %c0_i32_9 : i32
    scf.if %11 {
      %c0_10 = arith.constant 0 : index
      %c0_11 = arith.constant 0 : index
      %12 = vector.load %arg7[%c0_10, %c0_11] : memref<16x128xf32, #tpu.memory_space<vmem>>, vector<16x128xf32>
      %c0_12 = arith.constant 0 : index
      %c0_13 = arith.constant 0 : index
      %13 = vector.load %arg5[%c0_12, %c0_13] : memref<1x128xf32, #tpu.memory_space<vmem>>, vector<1x128xf32>
      %14 = vector.broadcast %13 : vector<1x128xf32> to vector<16x128xf32>
      %15 = arith.addf %12, %14 : vector<16x128xf32>
      %c0_14 = arith.constant 0 : index
      %c0_15 = arith.constant 0 : index
      %16 = vector.load %arg6[%c0_14, %c0_15] : memref<16x128xf32, #tpu.memory_space<vmem>>, vector<16x128xf32>
      tpu.vector_store %arg6[%c0_14, %c0_15], %15 {strides = array<i32>} : memref<16x128xf32, #tpu.memory_space<vmem>>, vector<16x128xf32>,
    } else {
    }
    return
  }
  func.func @transform_0(%arg0: i32, %arg1: i32, %arg2: i32) -> (i32, i32) {
    %c0_i32 = arith.constant 0 : i32
    return %arg0, %arg2 : i32, i32
  }
  func.func @transform_1(%arg0: i32, %arg1: i32, %arg2: i32) -> (i32, i32) {
    %c0_i32 = arith.constant 0 : i32
    return %arg2, %arg1 : i32, i32
  }
  func.func @transform_2(%arg0: i32, %arg1: i32, %arg2: i32) -> (i32, i32) {
    %c0_i32 = arith.constant 0 : i32
    %c0_i32_0 = arith.constant 0 : i32
    return %c0_i32, %arg1 : i32, i32
  }
  func.func @transform_3(%arg0: i32, %arg1: i32, %arg2: i32) -> (i32, i32) {
    %c0_i32 = arith.constant 0 : i32
    return %arg0, %arg1 : i32, i32
  }
}

</mosaic_0001>

<llo_original>
// kernel: forward.9
$region0: #{forward.9}
  #allocation0 [shape = 'u32[]', space=smem, size = 0x4, offset = 0x4, fixed_abs, tag = 'smem constant byte address 0x4 - core index']
  #allocation1 [shape = 'u32[144,128]{1,0:T(1,128)}', space=vmem, size = 0x12000, scoped, tag = 'internal scratch']
  #allocation2 [shape = 'f32[16,128]{1,0:T(8,128)}', space=vmem, size = 0x2000, scoped, tag = 'scratch operand']
  %s0 = inlined_call_operand.vmem [shape: bf16[16,32], index: 0, kind: input, shape index: {}]
  %s1 = inlined_call_operand.vmem [shape: bf16[32,128], index: 1, kind: input, shape index: {}]
  %s2 = inlined_call_operand.vmem [shape: f32[1,128], index: 2, kind: input, shape index: {}]
  %s3 = inlined_call_operand.vmem [shape: f32[16,128], index: 3, kind: output, shape index: {}]
  %s4 = sld [smem:[#allocation0]]
  $region30: #{forward.9} parent=0
    _
  %s6 = ssub.s32 1, %s4
  %s7 = scalar_select 0, %s6, %s4
  // Predicated region
  $region2: #{forward.9} parent=0 // pred_check
    _
  $region3: #{forward.9} parent=0 // pred_check_branch
    %9 = sbr.rel (0) target = $region5
  $region4: #{forward.9} parent=0 // pred_region
    _
  $region5: #{forward.9} parent=0 // pred_fallthru
    _
  // Predicated region
  $region6: #{forward.9} parent=0 // pred_check
    _
  $region7: #{forward.9} parent=0 // pred_check_branch
    %11 = sbr.rel (0) target = $region9
  $region8: #{forward.9} parent=0 // pred_region
    _
  $region9: #{forward.9} parent=0 // pred_fallthru
    _
  // Predicated region
  $region10: #{forward.9} parent=0 // pred_check
    _
  $region11: #{forward.9} parent=0 // pred_check_branch
    %13 = sbr.rel (0) target = $region13
  $region12: #{forward.9} parent=0 // pred_region
    _
  $region13: #{forward.9} parent=0 // pred_fallthru
    _
  %p15 = scmp.eq.s32.totalorder 0, 0
  // Predicated region
  $region14: #{forward.9} parent=0 // pred_check
    %p16 = pneg %p15
  $region15: #{forward.9} parent=0 // pred_check_branch
    %18 = sbr.rel (%p16) target = $region17
  $region16: #{forward.9} parent=0 // pred_region
    %19 = vst [vmem:[#allocation2] sm:$0xff] 0.0
    %20 = vst [vmem:[#allocation2 + $0x8] sm:$0xff] 0.0
  $region17: #{forward.9} parent=0 // pred_fallthru
    _
  %v21 = vld [vmem:[#allocation2] sm:$0xff]
  %v22 = vld [vmem:[#allocation2 + $0x8] sm:$0xff]
  %v23 = vld [vmem:[%s0] sm:$0xf]
  %v24 = vld [vmem:[%s0 + $0x4] sm:$0xf]
  %v25 = vld [vmem:[%s1] sm:$0xf]
  %v26 = vld [vmem:[%s1 + $0x4] sm:$0xf]
  %v27 = vld [vmem:[%s1 + $0x8] sm:$0xf]
  %v28 = vld [vmem:[%s1 + $0xc] sm:$0xf]
  %v31 = vunpack.c.l.b16 %v23
  %v32 = vunpack.c.l.b16 %v24
  %v33 = vpack.c.b16 %v32, %v31
  %v38 = vunpack.c.l.b16 %v25
  %v39 = vunpack.c.l.b16 %v26
  %v40 = vunpack.c.l.b16 %v27
  %v41 = vunpack.c.l.b16 %v28
  %v42 = vpack.c.b16 %v39, %v38
  %v43 = vpack.c.b16 %v41, %v40
  %vm46 = vcmask 261120
  %v48 = vsel %vm46, %v33, 0
  %50 = vmatprep.subr.bf16.mxu0 0
  %51 = vmatpush1.bf16.msra.mxu0 %v42
  %52 = vmatprep.subr.bf16.mxu0 0
  %53 = vmatpush1.bf16.msra.mxu0 %v43
  %54 = vmatprep.subr.bf16.mxu0 0
  %55 = vmatpush1.bf16.msra.mxu0 0
  %56 = vmatprep.subr.bf16.mxu0 0
  %57 = vmatpush1.bf16.msra.mxu0 0
  %58 = vmatprep.subr.bf16.mxu0 0
  %59 = vmatpush1.bf16.msra.mxu0 0
  %60 = vmatprep.subr.bf16.mxu0 0
  %61 = vmatpush1.bf16.msra.mxu0 0
  %62 = vmatprep.subr.bf16.mxu0 0
  %63 = vmatpush1.bf16.msra.mxu0 0
  %64 = vmatprep.subr.bf16.mxu0 0
  %65 = vmatpush1.bf16.msra.mxu0 0
  %66 = vmatprep.subr.bf16.mxu0 0
  %67 = vmatpush1.bf16.msra.mxu0 0
  %68 = vmatprep.subr.bf16.mxu0 0
  %69 = vmatpush1.bf16.msra.mxu0 0
  %70 = vmatprep.subr.bf16.mxu0 0
  %71 = vmatpush1.bf16.msra.mxu0 0
  %72 = vmatprep.subr.bf16.mxu0 0
  %73 = vmatpush1.bf16.msra.mxu0 0
  %74 = vmatprep.subr.bf16.mxu0 0
  %75 = vmatpush1.bf16.msra.mxu0 0
  %76 = vmatprep.subr.bf16.mxu0 0
  %77 = vmatpush1.bf16.msra.mxu0 0
  %78 = vmatprep.subr.bf16.mxu0 0
  %79 = vmatpush1.bf16.msra.mxu0 0
  %80 = vmatprep.subr.bf16.mxu0 0
  %81 = vmatpush1.bf16.msra.mxu0 0
  %82 = vmatprep.mubr.bf16.mxu0 0
  %83 = vmatmul.mubr.bf16.gmra.mrb[0].mxu0 %v48
  %v84 = vpop.f32.mrb[0].mxu0
  %v85 = vadd.f32 0.0, %v84
  %v86 = vpop.f32.mrb[0].mxu0
  %v87 = vpop.f32.mrb[0].mxu0
  %v88 = vadd.f32 0.0, %v87
  %v89 = vpop.f32.mrb[0].mxu0
  %90 = vdwg.mxu0
  %v91 = vadd.f32 %v21, %v85
  %v92 = vadd.f32 %v22, %v88
  %93 = vst [vmem:[#allocation2] sm:$0xff] %v91
  %94 = vst [vmem:[#allocation2 + $0x8] sm:$0xff] %v92
  // Predicated region
  $region18: #{forward.9} parent=0 // pred_check
    %p95 = pneg %p15
  $region19: #{forward.9} parent=0 // pred_check_branch
    %97 = sbr.rel (%p95) target = $region21
  $region20: #{forward.9} parent=0 // pred_region
    %v98 = vld [vmem:[#allocation2] sm:$0xff]
    %v99 = vld [vmem:[#allocation2 + $0x8] sm:$0xff]
    %v100 = vld [vmem:[%s2] sm:$0x1]
    %v102 = vlaneseq
    %v103 = vshrl.u32 %v102, 7
    %v104 = vsub.s32 0, %v103
    %v105 = vrot.slane %v100, %v104
    %v107 = vadd.f32 %v98, %v105
    %v108 = vadd.f32 %v99, %v105
    %109 = vst [vmem:[%s3] sm:$0xff] %v107
    %110 = vst [vmem:[%s3 + $0x8] sm:$0xff] %v108
  $region21: #{forward.9} parent=0 // pred_fallthru
    _
  // Predicated region
  $region22: #{forward.9} parent=0 // pred_check
    _
  $region23: #{forward.9} parent=0 // pred_check_branch
    %112 = sbr.rel (0) target = $region25
  $region24: #{forward.9} parent=0 // pred_region
    _
  $region25: #{forward.9} parent=0 // pred_fallthru
    _
  // Predicated region
  $region26: #{forward.9} parent=0 // pred_check
    _
  $region27: #{forward.9} parent=0 // pred_check_branch
    %114 = sbr.rel (0) target = $region29
  $region28: #{forward.9} parent=0 // pred_region
    _
  $region29: #{forward.9} parent=0 // pred_fallthru
    _

// kernel: forward.6
$region0: #{forward.6}
  #allocation0 [shape = 'u32[]', space=smem, size = 0x4, offset = 0x4, fixed_abs, tag = 'smem constant byte address 0x4 - core index']
  #allocation1 [shape = 'u32[144,128]{1,0:T(1,128)}', space=vmem, size = 0x12000, scoped, tag = 'internal scratch']
  #allocation2 [shape = 'bf16[8,32]{1,0:T(8,128)(2,1)}', space=vmem, size = 0x800, scoped, tag = 'scratch operand']
  #allocation3 [shape = 'f32[8,32]{1,0:T(8,128)}', space=vmem, size = 0x1000, scoped, tag = 'scratch operand']
  %s0 = inlined_call_operand.vmem [shape: bf16[2,8,32], index: 0, kind: input, shape index: {}]
  %s1 = inlined_call_operand.vmem [shape: f32[1,32], index: 1, kind: input, shape index: {}]
  %s2 = inlined_call_operand.vmem [shape: f32[1,32], index: 2, kind: input, shape index: {}]
  %s3 = inlined_call_operand.vmem [shape: bf16[32,64], index: 3, kind: input, shape index: {}]
  %s4 = inlined_call_operand.vmem [shape: f32[1,64], index: 4, kind: input, shape index: {}]
  %s5 = inlined_call_operand.vmem [shape: bf16[64,32], index: 5, kind: input, shape index: {}]
  %s6 = inlined_call_operand.vmem [shape: f32[1,32], index: 6, kind: input, shape index: {}]
  %s7 = inlined_call_operand.vmem [shape: bf16[2,8,32], index: 7, kind: output, shape index: {}]
  %s8 = sld [smem:[#allocation0]]
  $region69: #{forward.6} parent=0
    _
  %s10 = ssub.s32 1, %s8
  %s11 = scalar_select 0, %s10, %s8
  loop: start=0, step=1, limit=4
  $region2: #{forward.6} parent=0 // loop_pre_header
    _
  $region3: #{forward.6} parent=0 // loop_header
    %s13 = sphi 0, %s17
    %p14 = scmp.ge.s32.totalorder %s13, 4
    %s20 = sphi 0, %s39
    %s21 = sphi 0, %s35
    %s22 = sphi 0, %s31
    %s23 = sphi 0, %s20
    %s24 = sphi 0, %s21
    %s25 = sphi 0, %s22
    %s26 = sphi 0, %s23
    %s27 = sphi 0, %s24
    %s28 = sphi 0, %s25
    %s44 = sphi 0, %s46
    %s47 = sphi 0, %s44
    %s48 = sphi 0, %s47
    %s64 = sphi 0, %s48
    %s68 = sphi 0, %s68
    %s70 = sphi 0, %s68
    %s71 = sphi 0, %s70
    %s85 = sphi 0, %s71
    %s89 = sphi 0, %s89
    %s91 = sphi 0, %s89
    %s92 = sphi 0, %s91
    %s106 = sphi 0, %s92
    %s112 = sphi 0, %s114
    %s115 = sphi 0, %s112
    %s116 = sphi 0, %s115
    %s132 = sphi 0, %s116
    %s138 = sphi 0, %s140
    %s141 = sphi 0, %s138
    %s142 = sphi 0, %s141
    %s158 = sphi 0, %s142
    %s164 = sphi 0, %s166
    %s167 = sphi 0, %s164
    %s168 = sphi 0, %s167
    %s184 = sphi 0, %s168
    %s188 = sphi 0, %s188
    %s190 = sphi 0, %s188
    %s191 = sphi 0, %s190
    %s205 = sphi 0, %s191
    %s213 = sphi 0, %s215
    %s216 = sphi 0, %s213
    %s217 = sphi 0, %s216
    %s233 = sphi 0, %s217
  $region4: #{forward.6} parent=0 // loop_header_branch
    %16 = sbr.rel (%p14) target = $region8
  $region5: #{forward.6} parent=0 // loop_body
    %s18 = ssub.s32 %s13, 1
    %s19 = ssub.s32 %s13, 2
    %s29 = sadd.s32 1, %s22
    %p30 = scmp.ge.s32.totalorder %s29, 1
    %s31 = scalar_select %p30, 0, %s29
    %s32 = sadd.s32 1, %s21
    %s33 = scalar_select %p30, %s32, %s21
    %p34 = scmp.ge.s32.totalorder %s33, 1
    %s35 = scalar_select %p34, 0, %s33
    %s36 = sadd.s32 1, %s20
    %s37 = scalar_select %p34, %s36, %s20
    %p38 = scmp.ge.s32.totalorder %s37, 2
    %s39 = scalar_select %p38, 0, %s37
    %s40 = ssub.s32 %s20, %s39
    %s41 = ssub.s32 %s21, %s35
    %s42 = sor.u32 %s40, %s41
    %p43 = scmp.eq.s32.totalorder %s42, 0
    %s45 = sadd.s32 %s44, 1
    %s46 = scalar_select %p43, %s44, %s45
    %p49 = pneg %p43
    %p50 = scmp.eq.s32.totalorder %s13, 1
    %p51 = por %p49, %p50
    %p52 = scmp.ne.s32.totalorder %s44, %s47
    %p53 = scmp.eq.s32.totalorder %s13, 0
    %p54 = por %p52, %p53
    %p55 = scmp.ne.s32.totalorder %s44, %s47
    %p56 = scmp.eq.s32.totalorder %s18, 1
    %p57 = por %p55, %p56
    %p58 = scmp.ne.s32.totalorder %s47, %s48
    %p59 = scmp.eq.s32.totalorder %s18, 0
    %p60 = por %p58, %p59
    %p61 = scmp.ne.s32.totalorder %s47, %s48
    %p62 = scmp.eq.s32.totalorder %s19, 1
    %p63 = por %p61, %p62
    %p65 = scmp.ne.s32.totalorder %s48, %s64
    %p66 = scmp.eq.s32.totalorder %s19, 0
    %p67 = por %p65, %p66
    %s69 = sadd.s32 %s68, 1
    %p72 = scmp.eq.s32.totalorder %s13, 1
    %p73 = scmp.ne.s32.totalorder %s68, %s70
    %p74 = scmp.eq.s32.totalorder %s13, 0
    %p75 = por %p73, %p74
    %p76 = scmp.ne.s32.totalorder %s68, %s70
    %p77 = scmp.eq.s32.totalorder %s18, 1
    %p78 = por %p76, %p77
    %p79 = scmp.ne.s32.totalorder %s70, %s71
    %p80 = scmp.eq.s32.totalorder %s18, 0
    %p81 = por %p79, %p80
    %p82 = scmp.ne.s32.totalorder %s70, %s71
    %p83 = scmp.eq.s32.totalorder %s19, 1
    %p84 = por %p82, %p83
    %p86 = scmp.ne.s32.totalorder %s71, %s85
    %p87 = scmp.eq.s32.totalorder %s19, 0
    %p88 = por %p86, %p87
    %s90 = sadd.s32 %s89, 1
    %p93 = scmp.eq.s32.totalorder %s13, 1
    %p94 = scmp.ne.s32.totalorder %s89, %s91
    %p95 = scmp.eq.s32.totalorder %s13, 0
    %p96 = por %p94, %p95
    %p97 = scmp.ne.s32.totalorder %s89, %s91
    %p98 = scmp.eq.s32.totalorder %s18, 1
    %p99 = por %p97, %p98
    %p100 = scmp.ne.s32.totalorder %s91, %s92
    %p101 = scmp.eq.s32.totalorder %s18, 0
    %p102 = por %p100, %p101
    %p103 = scmp.ne.s32.totalorder %s91, %s92
    %p104 = scmp.eq.s32.totalorder %s19, 1
    %p105 = por %p103, %p104
    %p107 = scmp.ne.s32.totalorder %s92, %s106
    %p108 = scmp.eq.s32.totalorder %s19, 0
    %p109 = por %p107, %p108
    %s110 = ssub.s32 %s22, %s31
    %p111 = scmp.eq.s32.totalorder %s110, 0
    %s113 = sadd.s32 %s112, 1
    %s114 = scalar_select %p111, %s112, %s113
    %p117 = pneg %p111
    %p118 = scmp.eq.s32.totalorder %s13, 1
    %p119 = por %p117, %p118
    %p120 = scmp.ne.s32.totalorder %s112, %s115
    %p121 = scmp.eq.s32.totalorder %s13, 0
    %p122 = por %p120, %p121
    %p123 = scmp.ne.s32.totalorder %s112, %s115
    %p124 = scmp.eq.s32.totalorder %s18, 1
    %p125 = por %p123, %p124
    %p126 = scmp.ne.s32.totalorder %s115, %s116
    %p127 = scmp.eq.s32.totalorder %s18, 0
    %p128 = por %p126, %p127
    %p129 = scmp.ne.s32.totalorder %s115, %s116
    %p130 = scmp.eq.s32.totalorder %s19, 1
    %p131 = por %p129, %p130
    %p133 = scmp.ne.s32.totalorder %s116, %s132
    %p134 = scmp.eq.s32.totalorder %s19, 0
    %p135 = por %p133, %p134
    %s136 = ssub.s32 %s22, %s31
    %p137 = scmp.eq.s32.totalorder %s136, 0
    %s139 = sadd.s32 %s138, 1
    %s140 = scalar_select %p137, %s138, %s139
    %p143 = pneg %p137
    %p144 = scmp.eq.s32.totalorder %s13, 1
    %p145 = por %p143, %p144
    %p146 = scmp.ne.s32.totalorder %s138, %s141
    %p147 = scmp.eq.s32.totalorder %s13, 0
    %p148 = por %p146, %p147
    %p149 = scmp.ne.s32.totalorder %s138, %s141
    %p150 = scmp.eq.s32.totalorder %s18, 1
    %p151 = por %p149, %p150
    %p152 = scmp.ne.s32.totalorder %s141, %s142
    %p153 = scmp.eq.s32.totalorder %s18, 0
    %p154 = por %p152, %p153
    %p155 = scmp.ne.s32.totalorder %s141, %s142
    %p156 = scmp.eq.s32.totalorder %s19, 1
    %p157 = por %p155, %p156
    %p159 = scmp.ne.s32.totalorder %s142, %s158
    %p160 = scmp.eq.s32.totalorder %s19, 0
    %p161 = por %p159, %p160
    %s162 = ssub.s32 %s22, %s31
    %p163 = scmp.eq.s32.totalorder %s162, 0
    %s165 = sadd.s32 %s164, 1
    %s166 = scalar_select %p163, %s164, %s165
    %p169 = pneg %p163
    %p170 = scmp.eq.s32.totalorder %s13, 1
    %p171 = por %p169, %p170
    %p172 = scmp.ne.s32.totalorder %s164, %s167
    %p173 = scmp.eq.s32.totalorder %s13, 0
    %p174 = por %p172, %p173
    %p175 = scmp.ne.s32.totalorder %s164, %s167
    %p176 = scmp.eq.s32.totalorder %s18, 1
    %p177 = por %p175, %p176
    %p178 = scmp.ne.s32.totalorder %s167, %s168
    %p179 = scmp.eq.s32.totalorder %s18, 0
    %p180 = por %p178, %p179
    %p181 = scmp.ne.s32.totalorder %s167, %s168
    %p182 = scmp.eq.s32.totalorder %s19, 1
    %p183 = por %p181, %p182
    %p185 = scmp.ne.s32.totalorder %s168, %s184
    %p186 = scmp.eq.s32.totalorder %s19, 0
    %p187 = por %p185, %p186
    %s189 = sadd.s32 %s188, 1
    %p192 = scmp.eq.s32.totalorder %s13, 1
    %p193 = scmp.ne.s32.totalorder %s188, %s190
    %p194 = scmp.eq.s32.totalorder %s13, 0
    %p195 = por %p193, %p194
    %p196 = scmp.ne.s32.totalorder %s188, %s190
    %p197 = scmp.eq.s32.totalorder %s18, 1
    %p198 = por %p196, %p197
    %p199 = scmp.ne.s32.totalorder %s190, %s191
    %p200 = scmp.eq.s32.totalorder %s18, 0
    %p201 = por %p199, %p200
    %p202 = scmp.ne.s32.totalorder %s190, %s191
    %p203 = scmp.eq.s32.totalorder %s19, 1
    %p204 = por %p202, %p203
    %p206 = scmp.ne.s32.totalorder %s191, %s205
    %p207 = scmp.eq.s32.totalorder %s19, 0
    %p208 = por %p206, %p207
    %s209 = ssub.s32 %s20, %s39
    %s210 = ssub.s32 %s21, %s35
    %s211 = sor.u32 %s209, %s210
    %p212 = scmp.eq.s32.totalorder %s211, 0
    %s214 = sadd.s32 %s213, 1
    %s215 = scalar_select %p212, %s213, %s214
    %p218 = pneg %p212
    %p219 = scmp.eq.s32.totalorder %s13, 1
    %p220 = por %p218, %p219
    %p221 = scmp.ne.s32.totalorder %s213, %s216
    %p222 = scmp.eq.s32.totalorder %s13, 0
    %p223 = por %p221, %p222
    %p224 = scmp.ne.s32.totalorder %s213, %s216
    %p225 = scmp.eq.s32.totalorder %s18, 1
    %p226 = por %p224, %p225
    %p227 = scmp.ne.s32.totalorder %s216, %s217
    %p228 = scmp.eq.s32.totalorder %s18, 0
    %p229 = por %p227, %p228
    %p230 = scmp.ne.s32.totalorder %s216, %s217
    %p231 = scmp.eq.s32.totalorder %s19, 1
    %p232 = por %p230, %p231
    %p234 = scmp.ne.s32.totalorder %s217, %s233
    %p235 = scmp.eq.s32.totalorder %s19, 0
    %p236 = por %p234, %p235
    %p237 = scmp.le.s32.totalorder 1, %s13
    %p238 = scmp.lt.s32.totalorder %s13, 3
    %p239 = pnand %p237, %p238
    %p240 = pneg %p239
    // Predicated region
    $region9: #{forward.6} parent=5 // pred_check
      _
    $region10: #{forward.6} parent=5 // pred_check_branch
      %242 = sbr.rel (%p239) target = $region12
    $region11: #{forward.6} parent=5 // pred_region
      %s243 = ssub.s32 %s13, 1
      // Predicated region
      $region13: #{forward.6} parent=11 // pred_check
        %p244 = pneg %p81
      $region14: #{forward.6} parent=11 // pred_check_branch
        %246 = sbr.rel (%p244) target = $region16
      $region15: #{forward.6} parent=11 // pred_region
        _
      $region16: #{forward.6} parent=11 // pred_fallthru
        _
      // Predicated region
      $region17: #{forward.6} parent=11 // pred_check
        %p247 = pneg %p102
      $region18: #{forward.6} parent=11 // pred_check_branch
        %249 = sbr.rel (%p247) target = $region20
      $region19: #{forward.6} parent=11 // pred_region
        _
      $region20: #{forward.6} parent=11 // pred_fallthru
        _
      // Predicated region
      $region21: #{forward.6} parent=11 // pred_check
        %p250 = pneg %p128
      $region22: #{forward.6} parent=11 // pred_check_branch
        %252 = sbr.rel (%p250) target = $region24
      $region23: #{forward.6} parent=11 // pred_region
        %p253 = scmp.lt.s32.totalorder %s25, 0
        %s254 = scalar_select %p253, %s25, 0
        %s255 = smul.addr %s254, 4
        %s256 = scalar_lea.vmem %s3, %s255
      $region24: #{forward.6} parent=11 // pred_fallthru
        _
      // Predicated region
      $region25: #{forward.6} parent=11 // pred_check
        %p257 = pneg %p154
      $region26: #{forward.6} parent=11 // pred_check_branch
        %259 = sbr.rel (%p257) target = $region28
      $region27: #{forward.6} parent=11 // pred_region
        %p260 = scmp.lt.s32.totalorder %s25, 0
        %s261 = scalar_select %p260, %s25, 0
        %s262 = scalar_lea.vmem %s4, %s261
      $region28: #{forward.6} parent=11 // pred_fallthru
        _
      // Predicated region
      $region29: #{forward.6} parent=11 // pred_check
        %p263 = pneg %p180
      $region30: #{forward.6} parent=11 // pred_check_branch
        %265 = sbr.rel (%p263) target = $region32
      $region31: #{forward.6} parent=11 // pred_region
        %s266 = smul.u32 8, %s25
        %p267 = scmp.lt.s32.totalorder %s266, 7
        %s268 = scalar_select %p267, %s266, 7
        %s269 = smul.addr %s268, 4
        %s270 = scalar_lea.vmem %s5, %s269
        %s271 = smul.u32 8, %s25
      $region32: #{forward.6} parent=11 // pred_fallthru
        _
      // Predicated region
      $region33: #{forward.6} parent=11 // pred_check
        %p272 = pneg %p201
      $region34: #{forward.6} parent=11 // pred_check_branch
        %274 = sbr.rel (%p272) target = $region36
      $region35: #{forward.6} parent=11 // pred_region
        _
      $region36: #{forward.6} parent=11 // pred_fallthru
        _
    $region12: #{forward.6} parent=5 // pred_fallthru
      _
    %p275 = scmp.lt.s32.totalorder %s13, 2
    // Predicated region
    $region37: #{forward.6} parent=5 // pred_check
      %p276 = pneg %p275
    $region38: #{forward.6} parent=5 // pred_check_branch
      %278 = sbr.rel (%p276) target = $region40
    $region39: #{forward.6} parent=5 // pred_region
      // Predicated region
      $region41: #{forward.6} parent=39 // pred_check
        %p279 = pneg %p54
      $region42: #{forward.6} parent=39 // pred_check_branch
        %281 = sbr.rel (%p279) target = $region44
      $region43: #{forward.6} parent=39 // pred_region
        %p282 = scmp.lt.s32.totalorder %s20, 1
        %s283 = scalar_select %p282, %s20, 1
        %p284 = scmp.lt.s32.totalorder %s21, 0
        %s285 = scalar_select %p284, %s21, 0
        %s286 = sadd.s32 %s285, %s283
        %s287 = smul.addr %s286, 4
        %s288 = scalar_lea.vmem %s0, %s287
      $region44: #{forward.6} parent=39 // pred_fallthru
        _
    $region40: #{forward.6} parent=5 // pred_fallthru
      _
    %p289 = scmp.le.s32.totalorder 1, %s13
    %p290 = scmp.lt.s32.totalorder %s13, 3
    %p291 = pnand %p289, %p290
    %p292 = pneg %p291
    // Predicated region
    $region45: #{forward.6} parent=5 // pred_check
      _
    $region46: #{forward.6} parent=5 // pred_check_branch
      %294 = sbr.rel (%p291) target = $region48
    $region47: #{forward.6} parent=5 // pred_region
      %s295 = ssub.s32 %s13, 1
      %p296 = scmp.lt.s32.totalorder %s23, 1
      %s297 = scalar_select %p296, %s23, 1
      %p298 = scmp.lt.s32.totalorder %s24, 0
      %s299 = scalar_select %p298, %s24, 0
      %s300 = sadd.s32 %s299, %s297
      %s301 = smul.addr %s300, 4
      %s302 = scalar_lea.vmem %s0, %s301
      %p303 = pneg %p60
      %p304 = pneg %p57
      %p305 = pneg %p81
      %p306 = pneg %p78
      %p307 = pneg %p102
      %p308 = pneg %p99
      %p309 = scmp.lt.s32.totalorder %s25, 0
      %s310 = scalar_select %p309, %s25, 0
      %s311 = smul.addr %s310, 4
      %s312 = scalar_lea.vmem %s3, %s311
      %p313 = pneg %p128
      %p314 = pneg %p125
      %p315 = scmp.lt.s32.totalorder %s25, 0
      %s316 = scalar_select %p315, %s25, 0
      %s317 = scalar_lea.vmem %s4, %s316
      %p318 = pneg %p154
      %p319 = pneg %p151
      %s320 = smul.u32 8, %s25
      %p321 = scmp.lt.s32.totalorder %s320, 7
      %s322 = scalar_select %p321, %s320, 7
      %s323 = smul.addr %s322, 4
      %s324 = scalar_lea.vmem %s5, %s323
      %p325 = pneg %p180
      %p326 = pneg %p177
      %p327 = pneg %p201
      %p328 = pneg %p198
      %p329 = pneg %p229
      %p330 = pneg %p226
      %p331 = scmp.lt.s32.totalorder %s23, 1
      %s332 = scalar_select %p331, %s23, 1
      %p333 = scmp.lt.s32.totalorder %s24, 0
      %s334 = scalar_select %p333, %s24, 0
      %s335 = sadd.s32 %s334, %s332
      %s336 = smul.addr %s335, 4
      %s337 = scalar_lea.vmem %s7, %s336
      %p338 = scmp.lt.s32.totalorder %s23, 1
      %s339 = scalar_select %p338, %s23, 1
      %p340 = scmp.lt.s32.totalorder %s24, 0
      %s341 = scalar_select %p340, %s24, 0
      %s342 = sadd.s32 %s341, %s339
      %s343 = smul.addr %s342, 4
      %s344 = scalar_lea.vmem %s0, %s343
      %p345 = scmp.lt.s32.totalorder %s25, 0
      %s346 = scalar_select %p345, %s25, 0
      %s347 = smul.addr %s346, 4
      %s348 = scalar_lea.vmem %s3, %s347
      %p349 = scmp.lt.s32.totalorder %s25, 0
      %s350 = scalar_select %p349, %s25, 0
      %s351 = scalar_lea.vmem %s4, %s350
      %s352 = smul.u32 8, %s25
      %p353 = scmp.lt.s32.totalorder %s352, 7
      %s354 = scalar_select %p353, %s352, 7
      %s355 = smul.addr %s354, 4
      %s356 = scalar_lea.vmem %s5, %s355
      %s357 = smul.u32 8, %s25
      %p358 = scmp.lt.s32.totalorder %s23, 1
      %s359 = scalar_select %p358, %s23, 1
      %p360 = scmp.lt.s32.totalorder %s24, 0
      %s361 = scalar_select %p360, %s24, 0
      %s362 = sadd.s32 %s361, %s359
      %s363 = smul.addr %s362, 4
      %s364 = scalar_lea.vmem %s7, %s363
      %p366 = scmp.eq.s32.totalorder %s25, 0
      // Predicated region
      $region49: #{forward.6} parent=47 // pred_check
        %p367 = pneg %p366
      $region50: #{forward.6} parent=47 // pred_check_branch
        %369 = sbr.rel (%p367) target = $region52
      $region51: #{forward.6} parent=47 // pred_region
        %v370 = vld [vmem:[%s344] sm:$0xf]
        %v371 = vunpack.c.l.bf16 %v370
        %vm372 = vcmask 261120
        %v373 = vsel %vm372, %v371, 0.0
        %374 = vadd.xlane.f32.xlu0 %v373
        %v375 = vpop.xlane.xlu0 %374
        %v376 = vrcp.pop 32.0
        %v377 = vmul.f32 %v375, %v376
        %v378 = vsub.f32 %v371, %v377
        %v379 = vmul.f32 %v378, %v378
        %v380 = vsel %vm372, %v379, 0.0
        %381 = vadd.xlane.f32.xlu0 %v380
        %v382 = vpop.xlane.xlu0 %381
        %v383 = vmul.f32 %v382, %v376
        %v384 = vadd.f32 %v383, 1e-05
        %v385 = vrsqrt.pop %v384
        %v386 = vmul.f32 %v378, %v385
        %v387 = vld [vmem:[%s1] sm:$0x1]
        %v389 = vlaneseq
        %v390 = vshrl.u32 %v389, 7
        %v391 = vsub.s32 0, %v390
        %v392 = vrot.slane %v387, %v391
        %v394 = vmul.f32 %v386, %v392
        %v395 = vld [vmem:[%s2] sm:$0x1]
        %v397 = vlaneseq
        %v398 = vshrl.u32 %v397, 7
        %v399 = vsub.s32 0, %v398
        %v400 = vrot.slane %v395, %v399
        %v402 = vadd.f32 %v394, %v400
        %v403 = vpack.c.bf16 %v402, %v402
        %vm404 = vcmask 257024
        %405 = vst.msk [vmem:[#allocation2] sm:$0xf] %vm404, %v403
        %406 = vst.msk [vmem:[#allocation3] sm:$0xff] %vm372, 0.0
      $region52: #{forward.6} parent=47 // pred_fallthru
        _
      %v407 = vld [vmem:[#allocation2] sm:$0xf]
      %v408 = vld [vmem:[%s348] sm:$0xf]
      %v409 = vld [vmem:[%s348 + $0x4] sm:$0xf]
      %v410 = vld [vmem:[%s348 + $0x8] sm:$0xf]
      %v411 = vld [vmem:[%s348 + $0xc] sm:$0xf]
      %v412 = vld [vmem:[%s351] sm:$0x1]
      %v414 = vlaneseq
      %v415 = vshrl.u32 %v414, 7
      %v416 = vsub.s32 0, %v415
      %v417 = vrot.slane %v412, %v416
      %v423 = vunpack.c.l.b16 %v408
      %v424 = vunpack.c.l.b16 %v409
      %v425 = vunpack.c.l.b16 %v410
      %v426 = vunpack.c.l.b16 %v411
      %v427 = vpack.c.b16 %v424, %v423
      %v428 = vpack.c.b16 %v426, %v425
      %vm431 = vcmask 261120
      %v433 = vsel %vm431, %v407, 0
      %435 = vmatprep.subr.bf16.mxu0 0
      %436 = vmatpush1.bf16.msra.mxu0 %v427
      %437 = vmatprep.subr.bf16.mxu0 0
      %438 = vmatpush1.bf16.msra.mxu0 %v428
      %439 = vmatprep.subr.bf16.mxu0 0
      %440 = vmatpush1.bf16.msra.mxu0 0
      %441 = vmatprep.subr.bf16.mxu0 0
      %442 = vmatpush1.bf16.msra.mxu0 0
      %443 = vmatprep.subr.bf16.mxu0 0
      %444 = vmatpush1.bf16.msra.mxu0 0
      %445 = vmatprep.subr.bf16.mxu0 0
      %446 = vmatpush1.bf16.msra.mxu0 0
      %447 = vmatprep.subr.bf16.mxu0 0
      %448 = vmatpush1.bf16.msra.mxu0 0
      %449 = vmatprep.subr.bf16.mxu0 0
      %450 = vmatpush1.bf16.msra.mxu0 0
      %451 = vmatprep.subr.bf16.mxu0 0
      %452 = vmatpush1.bf16.msra.mxu0 0
      %453 = vmatprep.subr.bf16.mxu0 0
      %454 = vmatpush1.bf16.msra.mxu0 0
      %455 = vmatprep.subr.bf16.mxu0 0
      %456 = vmatpush1.bf16.msra.mxu0 0
      %457 = vmatprep.subr.bf16.mxu0 0
      %458 = vmatpush1.bf16.msra.mxu0 0
      %459 = vmatprep.subr.bf16.mxu0 0
      %460 = vmatpush1.bf16.msra.mxu0 0
      %461 = vmatprep.subr.bf16.mxu0 0
      %462 = vmatpush1.bf16.msra.mxu0 0
      %463 = vmatprep.subr.bf16.mxu0 0
      %464 = vmatpush1.bf16.msra.mxu0 0
      %465 = vmatprep.subr.bf16.mxu0 0
      %466 = vmatpush1.bf16.msra.mxu0 0
      %467 = vmatprep.mubr.bf16.mxu0 0
      %468 = vmatmul.mubr.bf16.gmra.mrb[0].mxu0 %v433
      %v469 = vpop.f32.mrb[0].mxu0
      %v470 = vadd.f32 %v417, %v469
      %v471 = vpop.f32.mrb[0].mxu0
      %v472 = vpop.f32.mrb[0].mxu0
      %v473 = vpop.f32.mrb[0].mxu0
      %474 = vdwg.mxu0
      %v475 = vmax.f32 %v470, 0.0
      %v476 = vld [vmem:[#allocation3] sm:$0xff]
      %v477 = vpack.c.bf16 %v475, %v475
      %v478 = vld [vmem:[%s356] sm:$0xf]
      %v479 = vld [vmem:[%s356 + $0x4] sm:$0xf]
      %v480 = vld [vmem:[%s356 + $0x8] sm:$0xf]
      %v481 = vld [vmem:[%s356 + $0xc] sm:$0xf]
      %v482 = vld [vmem:[%s356 + $0x10] sm:$0xf]
      %v483 = vld [vmem:[%s356 + $0x14] sm:$0xf]
      %v484 = vld [vmem:[%s356 + $0x18] sm:$0xf]
      %v485 = vld [vmem:[%s356 + $0x1c] sm:$0xf]
      %v494 = vunpack.c.l.b16 %v478
      %v495 = vunpack.c.l.b16 %v479
      %v496 = vunpack.c.l.b16 %v480
      %v497 = vunpack.c.l.b16 %v481
      %v498 = vunpack.c.l.b16 %v482
      %v499 = vunpack.c.l.b16 %v483
      %v500 = vunpack.c.l.b16 %v484
      %v501 = vunpack.c.l.b16 %v485
      %v502 = vpack.c.b16 %v495, %v494
      %v503 = vpack.c.b16 %v497, %v496
      %v504 = vpack.c.b16 %v499, %v498
      %v505 = vpack.c.b16 %v501, %v500
      %vm510 = vcmask 523264
      %v512 = vsel %vm510, %v477, 0
      %514 = vmatprep.subr.bf16.mxu0 0
      %515 = vmatpush1.bf16.msra.mxu0 %v502
      %516 = vmatprep.subr.bf16.mxu0 0
      %517 = vmatpush1.bf16.msra.mxu0 %v503
      %518 = vmatprep.subr.bf16.mxu0 0
      %519 = vmatpush1.bf16.msra.mxu0 %v504
      %520 = vmatprep.subr.bf16.mxu0 0
      %521 = vmatpush1.bf16.msra.mxu0 %v505
      %522 = vmatprep.subr.bf16.mxu0 0
      %523 = vmatpush1.bf16.msra.mxu0 0
      %524 = vmatprep.subr.bf16.mxu0 0
      %525 = vmatpush1.bf16.msra.mxu0 0
      %526 = vmatprep.subr.bf16.mxu0 0
      %527 = vmatpush1.bf16.msra.mxu0 0
      %528 = vmatprep.subr.bf16.mxu0 0
      %529 = vmatpush1.bf16.msra.mxu0 0
      %530 = vmatprep.subr.bf16.mxu0 0
      %531 = vmatpush1.bf16.msra.mxu0 0
      %532 = vmatprep.subr.bf16.mxu0 0
      %533 = vmatpush1.bf16.msra.mxu0 0
      %534 = vmatprep.subr.bf16.mxu0 0
      %535 = vmatpush1.bf16.msra.mxu0 0
      %536 = vmatprep.subr.bf16.mxu0 0
      %537 = vmatpush1.bf16.msra.mxu0 0
      %538 = vmatprep.subr.bf16.mxu0 0
      %539 = vmatpush1.bf16.msra.mxu0 0
      %540 = vmatprep.subr.bf16.mxu0 0
      %541 = vmatpush1.bf16.msra.mxu0 0
      %542 = vmatprep.subr.bf16.mxu0 0
      %543 = vmatpush1.bf16.msra.mxu0 0
      %544 = vmatprep.subr.bf16.mxu0 0
      %545 = vmatpush1.bf16.msra.mxu0 0
      %546 = vmatprep.mubr.bf16.mxu0 0
      %547 = vmatmul.mubr.bf16.gmra.mrb[0].mxu0 %v512
      %v548 = vpop.f32.mrb[0].mxu0
      %v549 = vadd.f32 0.0, %v548
      %v550 = vpop.f32.mrb[0].mxu0
      %v551 = vpop.f32.mrb[0].mxu0
      %v552 = vpop.f32.mrb[0].mxu0
      %553 = vdwg.mxu0
      %v554 = vadd.f32 %v476, %v549
      %555 = vst.msk [vmem:[#allocation3] sm:$0xff] %vm431, %v554
      // Predicated region
      $region53: #{forward.6} parent=47 // pred_check
        %p556 = pneg %p366
      $region54: #{forward.6} parent=47 // pred_check_branch
        %558 = sbr.rel (%p556) target = $region56
      $region55: #{forward.6} parent=47 // pred_region
        %v559 = vld [vmem:[%s344] sm:$0xf]
        %v560 = vunpack.c.l.bf16 %v559
        %v561 = vld [vmem:[#allocation3] sm:$0xff]
        %v562 = vadd.f32 %v560, %v561
        %v563 = vld [vmem:[%s6] sm:$0x1]
        %v565 = vlaneseq
        %v566 = vshrl.u32 %v565, 7
        %v567 = vsub.s32 0, %v566
        %v568 = vrot.slane %v563, %v567
        %v570 = vadd.f32 %v562, %v568
        %v571 = vpack.c.bf16 %v570, %v570
        %vm572 = vcmask 257024
        %573 = vst.msk [vmem:[%s364] sm:$0xf] %vm572, %v571
      $region56: #{forward.6} parent=47 // pred_fallthru
        _
      %p574 = scmp.lt.s32.totalorder %s23, 1
      %s575 = scalar_select %p574, %s23, 1
      %p576 = scmp.lt.s32.totalorder %s24, 0
      %s577 = scalar_select %p576, %s24, 0
      %s578 = sadd.s32 %s577, %s575
      %s579 = smul.addr %s578, 4
      %s580 = scalar_lea.vmem %s7, %s579
      // Predicated region
      $region57: #{forward.6} parent=47 // pred_check
        %p581 = pneg %p226
      $region58: #{forward.6} parent=47 // pred_check_branch
        %583 = sbr.rel (%p581) target = $region60
      $region59: #{forward.6} parent=47 // pred_region
        _
      $region60: #{forward.6} parent=47 // pred_fallthru
        _
    $region48: #{forward.6} parent=5 // pred_fallthru
      _
    %p584 = scmp.le.s32.totalorder 2, %s13
    // Predicated region
    $region61: #{forward.6} parent=5 // pred_check
      %p585 = pneg %p584
    $region62: #{forward.6} parent=5 // pred_check_branch
      %587 = sbr.rel (%p585) target = $region64
    $region63: #{forward.6} parent=5 // pred_region
      %s588 = ssub.s32 %s13, 2
      // Predicated region
      $region65: #{forward.6} parent=63 // pred_check
        %p589 = pneg %p232
      $region66: #{forward.6} parent=63 // pred_check_branch
        %591 = sbr.rel (%p589) target = $region68
      $region67: #{forward.6} parent=63 // pred_region
        %p592 = scmp.lt.s32.totalorder %s26, 1
        %s593 = scalar_select %p592, %s26, 1
        %p594 = scmp.lt.s32.totalorder %s27, 0
        %s595 = scalar_select %p594, %s27, 0
        %s596 = sadd.s32 %s595, %s593
        %s597 = smul.addr %s596, 4
        %s598 = scalar_lea.vmem %s7, %s597
      $region68: #{forward.6} parent=63 // pred_fallthru
        _
    $region64: #{forward.6} parent=5 // pred_fallthru
      _
  $region6: #{forward.6} parent=0 // loop_footer
    %s17 = sadd.s32 1, %s13
  $region7: #{forward.6} parent=0 // loop_footer_branch
    %12 = sbr.rel target = $region3
  $region8: #{forward.6} parent=0 // loop_exit
    _

// kernel: forward.5
$region0: #{forward.5}
  #allocation0 [shape = 'u32[]', space=smem, size = 0x4, offset = 0x4, fixed_abs, tag = 'smem constant byte address 0x4 - core index']
  #allocation1 [shape = 'u32[144,128]{1,0:T(1,128)}', space=vmem, size = 0x12000, scoped, tag = 'internal scratch']
  #allocation2 [shape = 'bf16[8,32]{1,0:T(8,128)(2,1)}', space=vmem, size = 0x800, scoped, tag = 'scratch operand']
  #allocation3 [shape = 'f32[8,8]{1,0:T(8,128)}', space=vmem, size = 0x1000, scoped, tag = 'scratch operand']
  #allocation4 [shape = 'f32[8,32]{1,0:T(8,128)}', space=vmem, size = 0x1000, scoped, tag = 'scratch operand']
  %s0 = inlined_call_operand.vmem [shape: bf16[2,8,32], index: 0, kind: input, shape index: {}]
  %s1 = inlined_call_operand.vmem [shape: f32[1,32], index: 1, kind: input, shape index: {}]
  %s2 = inlined_call_operand.vmem [shape: f32[1,32], index: 2, kind: input, shape index: {}]
  %s3 = inlined_call_operand.vmem [shape: bf16[4,32,8], index: 3, kind: input, shape index: {}]
  %s4 = inlined_call_operand.vmem [shape: bf16[4,32,8], index: 4, kind: input, shape index: {}]
  %s5 = inlined_call_operand.vmem [shape: bf16[4,32,8], index: 5, kind: input, shape index: {}]
  %s6 = inlined_call_operand.vmem [shape: f32[4,1,8], index: 6, kind: input, shape index: {}]
  %s7 = inlined_call_operand.vmem [shape: f32[4,1,8], index: 7, kind: input, shape index: {}]
  %s8 = inlined_call_operand.vmem [shape: f32[4,1,8], index: 8, kind: input, shape index: {}]
  %s9 = inlined_call_operand.vmem [shape: bf16[4,8,32], index: 9, kind: input, shape index: {}]
  %s10 = inlined_call_operand.vmem [shape: f32[1,32], index: 10, kind: input, shape index: {}]
  %s11 = inlined_call_operand.vmem [shape: bf16[2,8,32], index: 11, kind: output, shape index: {}]
  %s12 = sld [smem:[#allocation0]]
  $region85: #{forward.5} parent=0
    _
  %s14 = ssub.s32 1, %s12
  %s15 = scalar_select 0, %s14, %s12
  loop: start=0, step=1, limit=10
  $region2: #{forward.5} parent=0 // loop_pre_header
    _
  $region3: #{forward.5} parent=0 // loop_header
    %s17 = sphi 0, %s21
    %p18 = scmp.ge.s32.totalorder %s17, 10
    %s24 = sphi 0, %s36
    %s25 = sphi 0, %s32
    %s26 = sphi 0, %s24
    %s27 = sphi 0, %s25
    %s28 = sphi 0, %s26
    %s29 = sphi 0, %s27
    %s39 = sphi 0, %s41
    %s42 = sphi 0, %s39
    %s43 = sphi 0, %s42
    %s59 = sphi 0, %s43
    %s63 = sphi 0, %s63
    %s65 = sphi 0, %s63
    %s66 = sphi 0, %s65
    %s80 = sphi 0, %s66
    %s84 = sphi 0, %s84
    %s86 = sphi 0, %s84
    %s87 = sphi 0, %s86
    %s101 = sphi 0, %s87
    %s107 = sphi 0, %s109
    %s110 = sphi 0, %s107
    %s111 = sphi 0, %s110
    %s127 = sphi 0, %s111
    %s133 = sphi 0, %s135
    %s136 = sphi 0, %s133
    %s137 = sphi 0, %s136
    %s153 = sphi 0, %s137
    %s159 = sphi 0, %s161
    %s162 = sphi 0, %s159
    %s163 = sphi 0, %s162
    %s179 = sphi 0, %s163
    %s185 = sphi 0, %s187
    %s188 = sphi 0, %s185
    %s189 = sphi 0, %s188
    %s205 = sphi 0, %s189
    %s211 = sphi 0, %s213
    %s214 = sphi 0, %s211
    %s215 = sphi 0, %s214
    %s231 = sphi 0, %s215
    %s237 = sphi 0, %s239
    %s240 = sphi 0, %s237
    %s241 = sphi 0, %s240
    %s257 = sphi 0, %s241
    %s263 = sphi 0, %s265
    %s266 = sphi 0, %s263
    %s267 = sphi 0, %s266
    %s283 = sphi 0, %s267
    %s287 = sphi 0, %s287
    %s289 = sphi 0, %s287
    %s290 = sphi 0, %s289
    %s304 = sphi 0, %s290
    %s310 = sphi 0, %s312
    %s313 = sphi 0, %s310
    %s314 = sphi 0, %s313
    %s330 = sphi 0, %s314
  $region4: #{forward.5} parent=0 // loop_header_branch
    %20 = sbr.rel (%p18) target = $region8
  $region5: #{forward.5} parent=0 // loop_body
    %s22 = ssub.s32 %s17, 1
    %s23 = ssub.s32 %s17, 2
    %s30 = sadd.s32 1, %s25
    %p31 = scmp.ge.s32.totalorder %s30, 4
    %s32 = scalar_select %p31, 0, %s30
    %s33 = sadd.s32 1, %s24
    %s34 = scalar_select %p31, %s33, %s24
    %p35 = scmp.ge.s32.totalorder %s34, 2
    %s36 = scalar_select %p35, 0, %s34
    %s37 = ssub.s32 %s24, %s36
    %p38 = scmp.eq.s32.totalorder %s37, 0
    %s40 = sadd.s32 %s39, 1
    %s41 = scalar_select %p38, %s39, %s40
    %p44 = pneg %p38
    %p45 = scmp.eq.s32.totalorder %s17, 7
    %p46 = por %p44, %p45
    %p47 = scmp.ne.s32.totalorder %s39, %s42
    %p48 = scmp.eq.s32.totalorder %s17, 0
    %p49 = por %p47, %p48
    %p50 = scmp.ne.s32.totalorder %s39, %s42
    %p51 = scmp.eq.s32.totalorder %s22, 7
    %p52 = por %p50, %p51
    %p53 = scmp.ne.s32.totalorder %s42, %s43
    %p54 = scmp.eq.s32.totalorder %s22, 0
    %p55 = por %p53, %p54
    %p56 = scmp.ne.s32.totalorder %s42, %s43
    %p57 = scmp.eq.s32.totalorder %s23, 7
    %p58 = por %p56, %p57
    %p60 = scmp.ne.s32.totalorder %s43, %s59
    %p61 = scmp.eq.s32.totalorder %s23, 0
    %p62 = por %p60, %p61
    %s64 = sadd.s32 %s63, 1
    %p67 = scmp.eq.s32.totalorder %s17, 7
    %p68 = scmp.ne.s32.totalorder %s63, %s65
    %p69 = scmp.eq.s32.totalorder %s17, 0
    %p70 = por %p68, %p69
    %p71 = scmp.ne.s32.totalorder %s63, %s65
    %p72 = scmp.eq.s32.totalorder %s22, 7
    %p73 = por %p71, %p72
    %p74 = scmp.ne.s32.totalorder %s65, %s66
    %p75 = scmp.eq.s32.totalorder %s22, 0
    %p76 = por %p74, %p75
    %p77 = scmp.ne.s32.totalorder %s65, %s66
    %p78 = scmp.eq.s32.totalorder %s23, 7
    %p79 = por %p77, %p78
    %p81 = scmp.ne.s32.totalorder %s66, %s80
    %p82 = scmp.eq.s32.totalorder %s23, 0
    %p83 = por %p81, %p82
    %s85 = sadd.s32 %s84, 1
    %p88 = scmp.eq.s32.totalorder %s17, 7
    %p89 = scmp.ne.s32.totalorder %s84, %s86
    %p90 = scmp.eq.s32.totalorder %s17, 0
    %p91 = por %p89, %p90
    %p92 = scmp.ne.s32.totalorder %s84, %s86
    %p93 = scmp.eq.s32.totalorder %s22, 7
    %p94 = por %p92, %p93
    %p95 = scmp.ne.s32.totalorder %s86, %s87
    %p96 = scmp.eq.s32.totalorder %s22, 0
    %p97 = por %p95, %p96
    %p98 = scmp.ne.s32.totalorder %s86, %s87
    %p99 = scmp.eq.s32.totalorder %s23, 7
    %p100 = por %p98, %p99
    %p102 = scmp.ne.s32.totalorder %s87, %s101
    %p103 = scmp.eq.s32.totalorder %s23, 0
    %p104 = por %p102, %p103
    %s105 = ssub.s32 %s25, %s32
    %p106 = scmp.eq.s32.totalorder %s105, 0
    %s108 = sadd.s32 %s107, 1
    %s109 = scalar_select %p106, %s107, %s108
    %p112 = pneg %p106
    %p113 = scmp.eq.s32.totalorder %s17, 7
    %p114 = por %p112, %p113
    %p115 = scmp.ne.s32.totalorder %s107, %s110
    %p116 = scmp.eq.s32.totalorder %s17, 0
    %p117 = por %p115, %p116
    %p118 = scmp.ne.s32.totalorder %s107, %s110
    %p119 = scmp.eq.s32.totalorder %s22, 7
    %p120 = por %p118, %p119
    %p121 = scmp.ne.s32.totalorder %s110, %s111
    %p122 = scmp.eq.s32.totalorder %s22, 0
    %p123 = por %p121, %p122
    %p124 = scmp.ne.s32.totalorder %s110, %s111
    %p125 = scmp.eq.s32.totalorder %s23, 7
    %p126 = por %p124, %p125
    %p128 = scmp.ne.s32.totalorder %s111, %s127
    %p129 = scmp.eq.s32.totalorder %s23, 0
    %p130 = por %p128, %p129
    %s131 = ssub.s32 %s25, %s32
    %p132 = scmp.eq.s32.totalorder %s131, 0
    %s134 = sadd.s32 %s133, 1
    %s135 = scalar_select %p132, %s133, %s134
    %p138 = pneg %p132
    %p139 = scmp.eq.s32.totalorder %s17, 7
    %p140 = por %p138, %p139
    %p141 = scmp.ne.s32.totalorder %s133, %s136
    %p142 = scmp.eq.s32.totalorder %s17, 0
    %p143 = por %p141, %p142
    %p144 = scmp.ne.s32.totalorder %s133, %s136
    %p145 = scmp.eq.s32.totalorder %s22, 7
    %p146 = por %p144, %p145
    %p147 = scmp.ne.s32.totalorder %s136, %s137
    %p148 = scmp.eq.s32.totalorder %s22, 0
    %p149 = por %p147, %p148
    %p150 = scmp.ne.s32.totalorder %s136, %s137
    %p151 = scmp.eq.s32.totalorder %s23, 7
    %p152 = por %p150, %p151
    %p154 = scmp.ne.s32.totalorder %s137, %s153
    %p155 = scmp.eq.s32.totalorder %s23, 0
    %p156 = por %p154, %p155
    %s157 = ssub.s32 %s25, %s32
    %p158 = scmp.eq.s32.totalorder %s157, 0
    %s160 = sadd.s32 %s159, 1
    %s161 = scalar_select %p158, %s159, %s160
    %p164 = pneg %p158
    %p165 = scmp.eq.s32.totalorder %s17, 7
    %p166 = por %p164, %p165
    %p167 = scmp.ne.s32.totalorder %s159, %s162
    %p168 = scmp.eq.s32.totalorder %s17, 0
    %p169 = por %p167, %p168
    %p170 = scmp.ne.s32.totalorder %s159, %s162
    %p171 = scmp.eq.s32.totalorder %s22, 7
    %p172 = por %p170, %p171
    %p173 = scmp.ne.s32.totalorder %s162, %s163
    %p174 = scmp.eq.s32.totalorder %s22, 0
    %p175 = por %p173, %p174
    %p176 = scmp.ne.s32.totalorder %s162, %s163
    %p177 = scmp.eq.s32.totalorder %s23, 7
    %p178 = por %p176, %p177
    %p180 = scmp.ne.s32.totalorder %s163, %s179
    %p181 = scmp.eq.s32.totalorder %s23, 0
    %p182 = por %p180, %p181
    %s183 = ssub.s32 %s25, %s32
    %p184 = scmp.eq.s32.totalorder %s183, 0
    %s186 = sadd.s32 %s185, 1
    %s187 = scalar_select %p184, %s185, %s186
    %p190 = pneg %p184
    %p191 = scmp.eq.s32.totalorder %s17, 7
    %p192 = por %p190, %p191
    %p193 = scmp.ne.s32.totalorder %s185, %s188
    %p194 = scmp.eq.s32.totalorder %s17, 0
    %p195 = por %p193, %p194
    %p196 = scmp.ne.s32.totalorder %s185, %s188
    %p197 = scmp.eq.s32.totalorder %s22, 7
    %p198 = por %p196, %p197
    %p199 = scmp.ne.s32.totalorder %s188, %s189
    %p200 = scmp.eq.s32.totalorder %s22, 0
    %p201 = por %p199, %p200
    %p202 = scmp.ne.s32.totalorder %s188, %s189
    %p203 = scmp.eq.s32.totalorder %s23, 7
    %p204 = por %p202, %p203
    %p206 = scmp.ne.s32.totalorder %s189, %s205
    %p207 = scmp.eq.s32.totalorder %s23, 0
    %p208 = por %p206, %p207
    %s209 = ssub.s32 %s25, %s32
    %p210 = scmp.eq.s32.totalorder %s209, 0
    %s212 = sadd.s32 %s211, 1
    %s213 = scalar_select %p210, %s211, %s212
    %p216 = pneg %p210
    %p217 = scmp.eq.s32.totalorder %s17, 7
    %p218 = por %p216, %p217
    %p219 = scmp.ne.s32.totalorder %s211, %s214
    %p220 = scmp.eq.s32.totalorder %s17, 0
    %p221 = por %p219, %p220
    %p222 = scmp.ne.s32.totalorder %s211, %s214
    %p223 = scmp.eq.s32.totalorder %s22, 7
    %p224 = por %p222, %p223
    %p225 = scmp.ne.s32.totalorder %s214, %s215
    %p226 = scmp.eq.s32.totalorder %s22, 0
    %p227 = por %p225, %p226
    %p228 = scmp.ne.s32.totalorder %s214, %s215
    %p229 = scmp.eq.s32.totalorder %s23, 7
    %p230 = por %p228, %p229
    %p232 = scmp.ne.s32.totalorder %s215, %s231
    %p233 = scmp.eq.s32.totalorder %s23, 0
    %p234 = por %p232, %p233
    %s235 = ssub.s32 %s25, %s32
    %p236 = scmp.eq.s32.totalorder %s235, 0
    %s238 = sadd.s32 %s237, 1
    %s239 = scalar_select %p236, %s237, %s238
    %p242 = pneg %p236
    %p243 = scmp.eq.s32.totalorder %s17, 7
    %p244 = por %p242, %p243
    %p245 = scmp.ne.s32.totalorder %s237, %s240
    %p246 = scmp.eq.s32.totalorder %s17, 0
    %p247 = por %p245, %p246
    %p248 = scmp.ne.s32.totalorder %s237, %s240
    %p249 = scmp.eq.s32.totalorder %s22, 7
    %p250 = por %p248, %p249
    %p251 = scmp.ne.s32.totalorder %s240, %s241
    %p252 = scmp.eq.s32.totalorder %s22, 0
    %p253 = por %p251, %p252
    %p254 = scmp.ne.s32.totalorder %s240, %s241
    %p255 = scmp.eq.s32.totalorder %s23, 7
    %p256 = por %p254, %p255
    %p258 = scmp.ne.s32.totalorder %s241, %s257
    %p259 = scmp.eq.s32.totalorder %s23, 0
    %p260 = por %p258, %p259
    %s261 = ssub.s32 %s25, %s32
    %p262 = scmp.eq.s32.totalorder %s261, 0
    %s264 = sadd.s32 %s263, 1
    %s265 = scalar_select %p262, %s263, %s264
    %p268 = pneg %p262
    %p269 = scmp.eq.s32.totalorder %s17, 7
    %p270 = por %p268, %p269
    %p271 = scmp.ne.s32.totalorder %s263, %s266
    %p272 = scmp.eq.s32.totalorder %s17, 0
    %p273 = por %p271, %p272
    %p274 = scmp.ne.s32.totalorder %s263, %s266
    %p275 = scmp.eq.s32.totalorder %s22, 7
    %p276 = por %p274, %p275
    %p277 = scmp.ne.s32.totalorder %s266, %s267
    %p278 = scmp.eq.s32.totalorder %s22, 0
    %p279 = por %p277, %p278
    %p280 = scmp.ne.s32.totalorder %s266, %s267
    %p281 = scmp.eq.s32.totalorder %s23, 7
    %p282 = por %p280, %p281
    %p284 = scmp.ne.s32.totalorder %s267, %s283
    %p285 = scmp.eq.s32.totalorder %s23, 0
    %p286 = por %p284, %p285
    %s288 = sadd.s32 %s287, 1
    %p291 = scmp.eq.s32.totalorder %s17, 7
    %p292 = scmp.ne.s32.totalorder %s287, %s289
    %p293 = scmp.eq.s32.totalorder %s17, 0
    %p294 = por %p292, %p293
    %p295 = scmp.ne.s32.totalorder %s287, %s289
    %p296 = scmp.eq.s32.totalorder %s22, 7
    %p297 = por %p295, %p296
    %p298 = scmp.ne.s32.totalorder %s289, %s290
    %p299 = scmp.eq.s32.totalorder %s22, 0
    %p300 = por %p298, %p299
    %p301 = scmp.ne.s32.totalorder %s289, %s290
    %p302 = scmp.eq.s32.totalorder %s23, 7
    %p303 = por %p301, %p302
    %p305 = scmp.ne.s32.totalorder %s290, %s304
    %p306 = scmp.eq.s32.totalorder %s23, 0
    %p307 = por %p305, %p306
    %s308 = ssub.s32 %s24, %s36
    %p309 = scmp.eq.s32.totalorder %s308, 0
    %s311 = sadd.s32 %s310, 1
    %s312 = scalar_select %p309, %s310, %s311
    %p315 = pneg %p309
    %p316 = scmp.eq.s32.totalorder %s17, 7
    %p317 = por %p315, %p316
    %p318 = scmp.ne.s32.totalorder %s310, %s313
    %p319 = scmp.eq.s32.totalorder %s17, 0
    %p320 = por %p318, %p319
    %p321 = scmp.ne.s32.totalorder %s310, %s313
    %p322 = scmp.eq.s32.totalorder %s22, 7
    %p323 = por %p321, %p322
    %p324 = scmp.ne.s32.totalorder %s313, %s314
    %p325 = scmp.eq.s32.totalorder %s22, 0
    %p326 = por %p324, %p325
    %p327 = scmp.ne.s32.totalorder %s313, %s314
    %p328 = scmp.eq.s32.totalorder %s23, 7
    %p329 = por %p327, %p328
    %p331 = scmp.ne.s32.totalorder %s314, %s330
    %p332 = scmp.eq.s32.totalorder %s23, 0
    %p333 = por %p331, %p332
    %p334 = scmp.le.s32.totalorder 1, %s17
    %p335 = scmp.lt.s32.totalorder %s17, 9
    %p336 = pnand %p334, %p335
    %p337 = pneg %p336
    // Predicated region
    $region9: #{forward.5} parent=5 // pred_check
      _
    $region10: #{forward.5} parent=5 // pred_check_branch
      %339 = sbr.rel (%p336) target = $region12
    $region11: #{forward.5} parent=5 // pred_region
      %s340 = ssub.s32 %s17, 1
      // Predicated region
      $region13: #{forward.5} parent=11 // pred_check
        %p341 = pneg %p76
      $region14: #{forward.5} parent=11 // pred_check_branch
        %343 = sbr.rel (%p341) target = $region16
      $region15: #{forward.5} parent=11 // pred_region
        _
      $region16: #{forward.5} parent=11 // pred_fallthru
        _
      // Predicated region
      $region17: #{forward.5} parent=11 // pred_check
        %p344 = pneg %p97
      $region18: #{forward.5} parent=11 // pred_check_branch
        %346 = sbr.rel (%p344) target = $region20
      $region19: #{forward.5} parent=11 // pred_region
        _
      $region20: #{forward.5} parent=11 // pred_fallthru
        _
      // Predicated region
      $region21: #{forward.5} parent=11 // pred_check
        %p347 = pneg %p300
      $region22: #{forward.5} parent=11 // pred_check_branch
        %349 = sbr.rel (%p347) target = $region24
      $region23: #{forward.5} parent=11 // pred_region
        _
      $region24: #{forward.5} parent=11 // pred_fallthru
        _
    $region12: #{forward.5} parent=5 // pred_fallthru
      _
    %p350 = scmp.lt.s32.totalorder %s17, 8
    // Predicated region
    $region25: #{forward.5} parent=5 // pred_check
      %p351 = pneg %p350
    $region26: #{forward.5} parent=5 // pred_check_branch
      %353 = sbr.rel (%p351) target = $region28
    $region27: #{forward.5} parent=5 // pred_region
      // Predicated region
      $region29: #{forward.5} parent=27 // pred_check
        %p354 = pneg %p49
      $region30: #{forward.5} parent=27 // pred_check_branch
        %356 = sbr.rel (%p354) target = $region32
      $region31: #{forward.5} parent=27 // pred_region
        %p357 = scmp.lt.s32.totalorder %s24, 1
        %s358 = scalar_select %p357, %s24, 1
        %s359 = smul.addr %s358, 4
        %s360 = scalar_lea.vmem %s0, %s359
      $region32: #{forward.5} parent=27 // pred_fallthru
        _
      // Predicated region
      $region33: #{forward.5} parent=27 // pred_check
        %p361 = pneg %p117
      $region34: #{forward.5} parent=27 // pred_check_branch
        %363 = sbr.rel (%p361) target = $region36
      $region35: #{forward.5} parent=27 // pred_region
        %p364 = scmp.lt.s32.totalorder %s25, 3
        %s365 = scalar_select %p364, %s25, 3
        %s366 = smul.addr %s365, 4
        %s367 = smul.addr %s366, 4
        %s368 = scalar_lea.vmem %s3, %s367
      $region36: #{forward.5} parent=27 // pred_fallthru
        _
      // Predicated region
      $region37: #{forward.5} parent=27 // pred_check
        %p369 = pneg %p143
      $region38: #{forward.5} parent=27 // pred_check_branch
        %371 = sbr.rel (%p369) target = $region40
      $region39: #{forward.5} parent=27 // pred_region
        %p372 = scmp.lt.s32.totalorder %s25, 3
        %s373 = scalar_select %p372, %s25, 3
        %s374 = smul.addr %s373, 4
        %s375 = smul.addr %s374, 4
        %s376 = scalar_lea.vmem %s4, %s375
      $region40: #{forward.5} parent=27 // pred_fallthru
        _
      // Predicated region
      $region41: #{forward.5} parent=27 // pred_check
        %p377 = pneg %p169
      $region42: #{forward.5} parent=27 // pred_check_branch
        %379 = sbr.rel (%p377) target = $region44
      $region43: #{forward.5} parent=27 // pred_region
        %p380 = scmp.lt.s32.totalorder %s25, 3
        %s381 = scalar_select %p380, %s25, 3
        %s382 = smul.addr %s381, 4
        %s383 = smul.addr %s382, 4
        %s384 = scalar_lea.vmem %s5, %s383
      $region44: #{forward.5} parent=27 // pred_fallthru
        _
      // Predicated region
      $region45: #{forward.5} parent=27 // pred_check
        %p385 = pneg %p195
      $region46: #{forward.5} parent=27 // pred_check_branch
        %387 = sbr.rel (%p385) target = $region48
      $region47: #{forward.5} parent=27 // pred_region
        %p388 = scmp.lt.s32.totalorder %s25, 3
        %s389 = scalar_select %p388, %s25, 3
        %s390 = scalar_lea.vmem %s6, %s389
      $region48: #{forward.5} parent=27 // pred_fallthru
        _
      // Predicated region
      $region49: #{forward.5} parent=27 // pred_check
        %p391 = pneg %p221
      $region50: #{forward.5} parent=27 // pred_check_branch
        %393 = sbr.rel (%p391) target = $region52
      $region51: #{forward.5} parent=27 // pred_region
        %p394 = scmp.lt.s32.totalorder %s25, 3
        %s395 = scalar_select %p394, %s25, 3
        %s396 = scalar_lea.vmem %s7, %s395
      $region52: #{forward.5} parent=27 // pred_fallthru
        _
      // Predicated region
      $region53: #{forward.5} parent=27 // pred_check
        %p397 = pneg %p247
      $region54: #{forward.5} parent=27 // pred_check_branch
        %399 = sbr.rel (%p397) target = $region56
      $region55: #{forward.5} parent=27 // pred_region
        %p400 = scmp.lt.s32.totalorder %s25, 3
        %s401 = scalar_select %p400, %s25, 3
        %s402 = scalar_lea.vmem %s8, %s401
      $region56: #{forward.5} parent=27 // pred_fallthru
        _
      // Predicated region
      $region57: #{forward.5} parent=27 // pred_check
        %p403 = pneg %p273
      $region58: #{forward.5} parent=27 // pred_check_branch
        %405 = sbr.rel (%p403) target = $region60
      $region59: #{forward.5} parent=27 // pred_region
        %p406 = scmp.lt.s32.totalorder %s25, 3
        %s407 = scalar_select %p406, %s25, 3
        %s408 = smul.addr %s407, 4
        %s409 = scalar_lea.vmem %s9, %s408
      $region60: #{forward.5} parent=27 // pred_fallthru
        _
    $region28: #{forward.5} parent=5 // pred_fallthru
      _
    %p410 = scmp.le.s32.totalorder 1, %s17
    %p411 = scmp.lt.s32.totalorder %s17, 9
    %p412 = pnand %p410, %p411
    %p413 = pneg %p412
    // Predicated region
    $region61: #{forward.5} parent=5 // pred_check
      _
    $region62: #{forward.5} parent=5 // pred_check_branch
      %415 = sbr.rel (%p412) target = $region64
    $region63: #{forward.5} parent=5 // pred_region
      %s416 = ssub.s32 %s17, 1
      %p417 = scmp.lt.s32.totalorder %s26, 1
      %s418 = scalar_select %p417, %s26, 1
      %s419 = smul.addr %s418, 4
      %s420 = scalar_lea.vmem %s0, %s419
      %p421 = pneg %p55
      %p422 = pneg %p52
      %p423 = pneg %p76
      %p424 = pneg %p73
      %p425 = pneg %p97
      %p426 = pneg %p94
      %p427 = scmp.lt.s32.totalorder %s27, 3
      %s428 = scalar_select %p427, %s27, 3
      %s429 = smul.addr %s428, 4
      %s430 = smul.addr %s429, 4
      %s431 = scalar_lea.vmem %s3, %s430
      %p432 = pneg %p123
      %p433 = pneg %p120
      %p434 = scmp.lt.s32.totalorder %s27, 3
      %s435 = scalar_select %p434, %s27, 3
      %s436 = smul.addr %s435, 4
      %s437 = smul.addr %s436, 4
      %s438 = scalar_lea.vmem %s4, %s437
      %p439 = pneg %p149
      %p440 = pneg %p146
      %p441 = scmp.lt.s32.totalorder %s27, 3
      %s442 = scalar_select %p441, %s27, 3
      %s443 = smul.addr %s442, 4
      %s444 = smul.addr %s443, 4
      %s445 = scalar_lea.vmem %s5, %s444
      %p446 = pneg %p175
      %p447 = pneg %p172
      %p448 = scmp.lt.s32.totalorder %s27, 3
      %s449 = scalar_select %p448, %s27, 3
      %s450 = scalar_lea.vmem %s6, %s449
      %p451 = pneg %p201
      %p452 = pneg %p198
      %p453 = scmp.lt.s32.totalorder %s27, 3
      %s454 = scalar_select %p453, %s27, 3
      %s455 = scalar_lea.vmem %s7, %s454
      %p456 = pneg %p227
      %p457 = pneg %p224
      %p458 = scmp.lt.s32.totalorder %s27, 3
      %s459 = scalar_select %p458, %s27, 3
      %s460 = scalar_lea.vmem %s8, %s459
      %p461 = pneg %p253
      %p462 = pneg %p250
      %p463 = scmp.lt.s32.totalorder %s27, 3
      %s464 = scalar_select %p463, %s27, 3
      %s465 = smul.addr %s464, 4
      %s466 = scalar_lea.vmem %s9, %s465
      %p467 = pneg %p279
      %p468 = pneg %p276
      %p469 = pneg %p300
      %p470 = pneg %p297
      %p471 = pneg %p326
      %p472 = pneg %p323
      %p473 = scmp.lt.s32.totalorder %s26, 1
      %s474 = scalar_select %p473, %s26, 1
      %s475 = smul.addr %s474, 4
      %s476 = scalar_lea.vmem %s11, %s475
      %p477 = scmp.lt.s32.totalorder %s26, 1
      %s478 = scalar_select %p477, %s26, 1
      %s479 = smul.addr %s478, 4
      %s480 = scalar_lea.vmem %s0, %s479
      %p481 = scmp.lt.s32.totalorder %s27, 3
      %s482 = scalar_select %p481, %s27, 3
      %s483 = smul.addr %s482, 4
      %s484 = smul.addr %s483, 4
      %s485 = scalar_lea.vmem %s3, %s484
      %p486 = scmp.lt.s32.totalorder %s27, 3
      %s487 = scalar_select %p486, %s27, 3
      %s488 = smul.addr %s487, 4
      %s489 = smul.addr %s488, 4
      %s490 = scalar_lea.vmem %s4, %s489
      %p491 = scmp.lt.s32.totalorder %s27, 3
      %s492 = scalar_select %p491, %s27, 3
      %s493 = smul.addr %s492, 4
      %s494 = smul.addr %s493, 4
      %s495 = scalar_lea.vmem %s5, %s494
      %p496 = scmp.lt.s32.totalorder %s27, 3
      %s497 = scalar_select %p496, %s27, 3
      %s498 = scalar_lea.vmem %s6, %s497
      %p499 = scmp.lt.s32.totalorder %s27, 3
      %s500 = scalar_select %p499, %s27, 3
      %s501 = scalar_lea.vmem %s7, %s500
      %p502 = scmp.lt.s32.totalorder %s27, 3
      %s503 = scalar_select %p502, %s27, 3
      %s504 = scalar_lea.vmem %s8, %s503
      %p505 = scmp.lt.s32.totalorder %s27, 3
      %s506 = scalar_select %p505, %s27, 3
      %s507 = smul.addr %s506, 4
      %s508 = scalar_lea.vmem %s9, %s507
      %p509 = scmp.lt.s32.totalorder %s26, 1
      %s510 = scalar_select %p509, %s26, 1
      %s511 = smul.addr %s510, 4
      %s512 = scalar_lea.vmem %s11, %s511
      %p514 = scmp.eq.s32.totalorder %s27, 0
      // Predicated region
      $region65: #{forward.5} parent=63 // pred_check
        %p515 = pneg %p514
      $region66: #{forward.5} parent=63 // pred_check_branch
        %517 = sbr.rel (%p515) target = $region68
      $region67: #{forward.5} parent=63 // pred_region
        %v518 = vld [vmem:[%s480] sm:$0xf]
        %v519 = vunpack.c.l.bf16 %v518
        %vm520 = vcmask 261120
        %v521 = vsel %vm520, %v519, 0.0
        %522 = vadd.xlane.f32.xlu0 %v521
        %v523 = vpop.xlane.xlu0 %522
        %v524 = vrcp.pop 32.0
        %v525 = vmul.f32 %v523, %v524
        %v526 = vsub.f32 %v519, %v525
        %v527 = vmul.f32 %v526, %v526
        %v528 = vsel %vm520, %v527, 0.0
        %529 = vadd.xlane.f32.xlu0 %v528
        %v530 = vpop.xlane.xlu0 %529
        %v531 = vmul.f32 %v530, %v524
        %v532 = vadd.f32 %v531, 1e-05
        %v533 = vrsqrt.pop %v532
        %v534 = vmul.f32 %v526, %v533
        %v535 = vld [vmem:[%s1] sm:$0x1]
        %v537 = vlaneseq
        %v538 = vshrl.u32 %v537, 7
        %v539 = vsub.s32 0, %v538
        %v540 = vrot.slane %v535, %v539
        %v542 = vmul.f32 %v534, %v540
        %v543 = vld [vmem:[%s2] sm:$0x1]
        %v545 = vlaneseq
        %v546 = vshrl.u32 %v545, 7
        %v547 = vsub.s32 0, %v546
        %v548 = vrot.slane %v543, %v547
        %v550 = vadd.f32 %v542, %v548
        %v551 = vpack.c.bf16 %v550, %v550
        %vm552 = vcmask 257024
        %553 = vst.msk [vmem:[#allocation2] sm:$0xf] %vm552, %v551
        %v554 = vlaneseq
        %v555 = vshrl.u32 %v554, 7
        %v556 = vlaneseq
        %v557 = vand.u32 %v556, 127
        %vm558 = vcmp.ge.s32.totalorder %v555, %v557
        %v559 = vsel %vm558, 0.0, -1e+30
        %vm560 = vcmask 64512
        %561 = vst.msk [vmem:[#allocation3] sm:$0xff] %vm560, %v559
        %562 = vst.msk [vmem:[#allocation4] sm:$0xff] %vm520, 0.0
      $region68: #{forward.5} parent=63 // pred_fallthru
        _
      %v563 = vld [vmem:[#allocation2] sm:$0xf]
      %v564 = vld [vmem:[%s485] sm:$0xf]
      %v565 = vld [vmem:[%s485 + $0x4] sm:$0xf]
      %v566 = vld [vmem:[%s485 + $0x8] sm:$0xf]
      %v567 = vld [vmem:[%s485 + $0xc] sm:$0xf]
      %v568 = vld [vmem:[%s498] sm:$0x1]
      %v570 = vlaneseq
      %v571 = vshrl.u32 %v570, 7
      %v572 = vsub.s32 0, %v571
      %v573 = vrot.slane %v568, %v572
      %v579 = vunpack.c.l.b16 %v564
      %v580 = vunpack.c.l.b16 %v565
      %v581 = vunpack.c.l.b16 %v566
      %v582 = vunpack.c.l.b16 %v567
      %v583 = vpack.c.b16 %v580, %v579
      %v584 = vpack.c.b16 %v582, %v581
      %vm587 = vcmask 261120
      %v589 = vsel %vm587, %v563, 0
      %591 = vmatprep.subr.bf16.mxu0 0
      %592 = vmatpush1.bf16.msra.mxu0 %v583
      %593 = vmatprep.subr.bf16.mxu0 0
      %594 = vmatpush1.bf16.msra.mxu0 %v584
      %595 = vmatprep.subr.bf16.mxu0 0
      %596 = vmatpush1.bf16.msra.mxu0 0
      %597 = vmatprep.subr.bf16.mxu0 0
      %598 = vmatpush1.bf16.msra.mxu0 0
      %599 = vmatprep.subr.bf16.mxu0 0
      %600 = vmatpush1.bf16.msra.mxu0 0
      %601 = vmatprep.subr.bf16.mxu0 0
      %602 = vmatpush1.bf16.msra.mxu0 0
      %603 = vmatprep.subr.bf16.mxu0 0
      %604 = vmatpush1.bf16.msra.mxu0 0
      %605 = vmatprep.subr.bf16.mxu0 0
      %606 = vmatpush1.bf16.msra.mxu0 0
      %607 = vmatprep.subr.bf16.mxu0 0
      %608 = vmatpush1.bf16.msra.mxu0 0
      %609 = vmatprep.subr.bf16.mxu0 0
      %610 = vmatpush1.bf16.msra.mxu0 0
      %611 = vmatprep.subr.bf16.mxu0 0
      %612 = vmatpush1.bf16.msra.mxu0 0
      %613 = vmatprep.subr.bf16.mxu0 0
      %614 = vmatpush1.bf16.msra.mxu0 0
      %615 = vmatprep.subr.bf16.mxu0 0
      %616 = vmatpush1.bf16.msra.mxu0 0
      %617 = vmatprep.subr.bf16.mxu0 0
      %618 = vmatpush1.bf16.msra.mxu0 0
      %619 = vmatprep.subr.bf16.mxu0 0
      %620 = vmatpush1.bf16.msra.mxu0 0
      %621 = vmatprep.subr.bf16.mxu0 0
      %622 = vmatpush1.bf16.msra.mxu0 0
      %623 = vmatprep.mubr.bf16.mxu0 0
      %624 = vmatmul.mubr.bf16.gmra.mrb[0].mxu0 %v589
      %v625 = vpop.f32.mrb[0].mxu0
      %v626 = vadd.f32 %v573, %v625
      %v627 = vpop.f32.mrb[0].mxu0
      %v628 = vpop.f32.mrb[0].mxu0
      %v629 = vpop.f32.mrb[0].mxu0
      %630 = vdwg.mxu0
      %v631 = vld [vmem:[%s490] sm:$0xf]
      %v632 = vld [vmem:[%s490 + $0x4] sm:$0xf]
      %v633 = vld [vmem:[%s490 + $0x8] sm:$0xf]
      %v634 = vld [vmem:[%s490 + $0xc] sm:$0xf]
      %v635 = vld [vmem:[%s501] sm:$0x1]
      %v637 = vlaneseq
      %v638 = vshrl.u32 %v637, 7
      %v639 = vsub.s32 0, %v638
      %v640 = vrot.slane %v635, %v639
      %v646 = vunpack.c.l.b16 %v631
      %v647 = vunpack.c.l.b16 %v632
      %v648 = vunpack.c.l.b16 %v633
      %v649 = vunpack.c.l.b16 %v634
      %v650 = vpack.c.b16 %v647, %v646
      %v651 = vpack.c.b16 %v649, %v648
      %654 = vmatprep.subr.bf16.mxu0 0
      %655 = vmatpush1.bf16.msra.mxu0 %v650
      %656 = vmatprep.subr.bf16.mxu0 0
      %657 = vmatpush1.bf16.msra.mxu0 %v651
      %658 = vmatprep.subr.bf16.mxu0 0
      %659 = vmatpush1.bf16.msra.mxu0 0
      %660 = vmatprep.subr.bf16.mxu0 0
      %661 = vmatpush1.bf16.msra.mxu0 0
      %662 = vmatprep.subr.bf16.mxu0 0
      %663 = vmatpush1.bf16.msra.mxu0 0
      %664 = vmatprep.subr.bf16.mxu0 0
      %665 = vmatpush1.bf16.msra.mxu0 0
      %666 = vmatprep.subr.bf16.mxu0 0
      %667 = vmatpush1.bf16.msra.mxu0 0
      %668 = vmatprep.subr.bf16.mxu0 0
      %669 = vmatpush1.bf16.msra.mxu0 0
      %670 = vmatprep.subr.bf16.mxu0 0
      %671 = vmatpush1.bf16.msra.mxu0 0
      %672 = vmatprep.subr.bf16.mxu0 0
      %673 = vmatpush1.bf16.msra.mxu0 0
      %674 = vmatprep.subr.bf16.mxu0 0
      %675 = vmatpush1.bf16.msra.mxu0 0
      %676 = vmatprep.subr.bf16.mxu0 0
      %677 = vmatpush1.bf16.msra.mxu0 0
      %678 = vmatprep.subr.bf16.mxu0 0
      %679 = vmatpush1.bf16.msra.mxu0 0
      %680 = vmatprep.subr.bf16.mxu0 0
      %681 = vmatpush1.bf16.msra.mxu0 0
      %682 = vmatprep.subr.bf16.mxu0 0
      %683 = vmatpush1.bf16.msra.mxu0 0
      %684 = vmatprep.subr.bf16.mxu0 0
      %685 = vmatpush1.bf16.msra.mxu0 0
      %686 = vmatprep.mubr.bf16.mxu0 0
      %687 = vmatmul.mubr.bf16.gmra.mrb[0].mxu0 %v589
      %v688 = vpop.f32.mrb[0].mxu0
      %v689 = vadd.f32 %v640, %v688
      %v690 = vpop.f32.mrb[0].mxu0
      %v691 = vpop.f32.mrb[0].mxu0
      %v692 = vpop.f32.mrb[0].mxu0
      %693 = vdwg.mxu0
      %v694 = vld [vmem:[%s495] sm:$0xf]
      %v695 = vld [vmem:[%s495 + $0x4] sm:$0xf]
      %v696 = vld [vmem:[%s495 + $0x8] sm:$0xf]
      %v697 = vld [vmem:[%s495 + $0xc] sm:$0xf]
      %v698 = vld [vmem:[%s504] sm:$0x1]
      %v700 = vlaneseq
      %v701 = vshrl.u32 %v700, 7
      %v702 = vsub.s32 0, %v701
      %v703 = vrot.slane %v698, %v702
      %v709 = vunpack.c.l.b16 %v694
      %v710 = vunpack.c.l.b16 %v695
      %v711 = vunpack.c.l.b16 %v696
      %v712 = vunpack.c.l.b16 %v697
      %v713 = vpack.c.b16 %v710, %v709
      %v714 = vpack.c.b16 %v712, %v711
      %717 = vmatprep.subr.bf16.mxu0 0
      %718 = vmatpush1.bf16.msra.mxu0 %v713
      %719 = vmatprep.subr.bf16.mxu0 0
      %720 = vmatpush1.bf16.msra.mxu0 %v714
      %721 = vmatprep.subr.bf16.mxu0 0
      %722 = vmatpush1.bf16.msra.mxu0 0
      %723 = vmatprep.subr.bf16.mxu0 0
      %724 = vmatpush1.bf16.msra.mxu0 0
      %725 = vmatprep.subr.bf16.mxu0 0
      %726 = vmatpush1.bf16.msra.mxu0 0
      %727 = vmatprep.subr.bf16.mxu0 0
      %728 = vmatpush1.bf16.msra.mxu0 0
      %729 = vmatprep.subr.bf16.mxu0 0
      %730 = vmatpush1.bf16.msra.mxu0 0
      %731 = vmatprep.subr.bf16.mxu0 0
      %732 = vmatpush1.bf16.msra.mxu0 0
      %733 = vmatprep.subr.bf16.mxu0 0
      %734 = vmatpush1.bf16.msra.mxu0 0
      %735 = vmatprep.subr.bf16.mxu0 0
      %736 = vmatpush1.bf16.msra.mxu0 0
      %737 = vmatprep.subr.bf16.mxu0 0
      %738 = vmatpush1.bf16.msra.mxu0 0
      %739 = vmatprep.subr.bf16.mxu0 0
      %740 = vmatpush1.bf16.msra.mxu0 0
      %741 = vmatprep.subr.bf16.mxu0 0
      %742 = vmatpush1.bf16.msra.mxu0 0
      %743 = vmatprep.subr.bf16.mxu0 0
      %744 = vmatpush1.bf16.msra.mxu0 0
      %745 = vmatprep.subr.bf16.mxu0 0
      %746 = vmatpush1.bf16.msra.mxu0 0
      %747 = vmatprep.subr.bf16.mxu0 0
      %748 = vmatpush1.bf16.msra.mxu0 0
      %749 = vmatprep.mubr.bf16.mxu0 0
      %750 = vmatmul.mubr.bf16.gmra.mrb[0].mxu0 %v589
      %v751 = vpop.f32.mrb[0].mxu0
      %v752 = vadd.f32 %v703, %v751
      %v753 = vpop.f32.mrb[0].mxu0
      %v754 = vpop.f32.mrb[0].mxu0
      %v755 = vpop.f32.mrb[0].mxu0
      %756 = vdwg.mxu0
      %v757 = vpack.c.bf16 %v626, %v626
      %v758 = vpack.c.bf16 %v689, %v689
      %v759 = vld [vmem:[#allocation3] sm:$0xff]
      %vm760 = vcmask 64512
      %v762 = vsel %vm760, %v757, 0
      %v765 = vsel %vm760, %v758, 0
      %767 = vmatprep.subr.bf16.mxu0 0
      %768 = vmatpush1.bf16.xpose.msra.mxu0 %v765
      %769 = vmatprep.subr.bf16.mxu0 0
      %770 = vmatpush1.bf16.xpose.msra.mxu0 0
      %771 = vmatprep.subr.bf16.mxu0 0
      %772 = vmatpush1.bf16.xpose.msra.mxu0 0
      %773 = vmatprep.subr.bf16.mxu0 0
      %774 = vmatpush1.bf16.xpose.msra.mxu0 0
      %775 = vmatprep.subr.bf16.mxu0 0
      %776 = vmatpush1.bf16.xpose.msra.mxu0 0
      %777 = vmatprep.subr.bf16.mxu0 0
      %778 = vmatpush1.bf16.xpose.msra.mxu0 0
      %779 = vmatprep.subr.bf16.mxu0 0
      %780 = vmatpush1.bf16.xpose.msra.mxu0 0
      %781 = vmatprep.subr.bf16.mxu0 0
      %782 = vmatpush1.bf16.xpose.msra.mxu0 0
      %783 = vmatprep.subr.bf16.mxu0 0
      %784 = vmatpush1.bf16.xpose.msra.mxu0 0
      %785 = vmatprep.subr.bf16.mxu0 0
      %786 = vmatpush1.bf16.xpose.msra.mxu0 0
      %787 = vmatprep.subr.bf16.mxu0 0
      %788 = vmatpush1.bf16.xpose.msra.mxu0 0
      %789 = vmatprep.subr.bf16.mxu0 0
      %790 = vmatpush1.bf16.xpose.msra.mxu0 0
      %791 = vmatprep.subr.bf16.mxu0 0
      %792 = vmatpush1.bf16.xpose.msra.mxu0 0
      %793 = vmatprep.subr.bf16.mxu0 0
      %794 = vmatpush1.bf16.xpose.msra.mxu0 0
      %795 = vmatprep.subr.bf16.mxu0 0
      %796 = vmatpush1.bf16.xpose.msra.mxu0 0
      %797 = vmatprep.subr.bf16.mxu0 0
      %798 = vmatpush1.bf16.xpose.msra.mxu0 0
      %799 = vmatprep.mubr.bf16.mxu0 0
      %800 = vmatmul.mubr.bf16.gmra.mrb[0].mxu0 %v762
      %v801 = vpop.f32.mrb[0].mxu0
      %v802 = vadd.f32 %v759, %v801
      %v803 = vpop.f32.mrb[0].mxu0
      %v804 = vpop.f32.mrb[0].mxu0
      %v805 = vpop.f32.mrb[0].mxu0
      %806 = vdwg.mxu0
      %v807 = vsel %vm760, %v802, -inf
      %808 = vmax.xlane.f32.xlu0 %v807
      %v809 = vpop.xlane.xlu0 %808
      %v810 = vsub.f32 %v802, %v809
      %v811 = vmul.f32 %v810, 1.442695
      %v812 = vpow.pop %v811
      %v813 = vsel %vm760, %v812, 0.0
      %814 = vadd.xlane.f32.xlu0 %v813
      %v815 = vpop.xlane.xlu0 %814
      %v816 = vpack.c.bf16 %v812, %v812
      %v817 = vpack.c.bf16 %v752, %v752
      %v819 = vsel %vm760, %v816, 0
      %vm821 = vcmask 1043456
      %v823 = vsel %vm821, %v817, 0
      %825 = vmatprep.subr.bf16.mxu0 0
      %826 = vmatpush1.bf16.msra.mxu0 %v823
      %827 = vmatprep.subr.bf16.mxu0 0
      %828 = vmatpush1.bf16.msra.mxu0 0
      %829 = vmatprep.subr.bf16.mxu0 0
      %830 = vmatpush1.bf16.msra.mxu0 0
      %831 = vmatprep.subr.bf16.mxu0 0
      %832 = vmatpush1.bf16.msra.mxu0 0
      %833 = vmatprep.subr.bf16.mxu0 0
      %834 = vmatpush1.bf16.msra.mxu0 0
      %835 = vmatprep.subr.bf16.mxu0 0
      %836 = vmatpush1.bf16.msra.mxu0 0
      %837 = vmatprep.subr.bf16.mxu0 0
      %838 = vmatpush1.bf16.msra.mxu0 0
      %839 = vmatprep.subr.bf16.mxu0 0
      %840 = vmatpush1.bf16.msra.mxu0 0
      %841 = vmatprep.subr.bf16.mxu0 0
      %842 = vmatpush1.bf16.msra.mxu0 0
      %843 = vmatprep.subr.bf16.mxu0 0
      %844 = vmatpush1.bf16.msra.mxu0 0
      %845 = vmatprep.subr.bf16.mxu0 0
      %846 = vmatpush1.bf16.msra.mxu0 0
      %847 = vmatprep.subr.bf16.mxu0 0
      %848 = vmatpush1.bf16.msra.mxu0 0
      %849 = vmatprep.subr.bf16.mxu0 0
      %850 = vmatpush1.bf16.msra.mxu0 0
      %851 = vmatprep.subr.bf16.mxu0 0
      %852 = vmatpush1.bf16.msra.mxu0 0
      %853 = vmatprep.subr.bf16.mxu0 0
      %854 = vmatpush1.bf16.msra.mxu0 0
      %855 = vmatprep.subr.bf16.mxu0 0
      %856 = vmatpush1.bf16.msra.mxu0 0
      %857 = vmatprep.mubr.bf16.mxu0 0
      %858 = vmatmul.mubr.bf16.gmra.mrb[0].mxu0 %v819
      %v859 = vpop.f32.mrb[0].mxu0
      %v860 = vadd.f32 0.0, %v859
      %v861 = vpop.f32.mrb[0].mxu0
      %v862 = vpop.f32.mrb[0].mxu0
      %v863 = vpop.f32.mrb[0].mxu0
      %864 = vdwg.mxu0
      %v865 = vrcp.pop %v815
      %v866 = vmul.f32 %v860, %v865
      %v867 = vld [vmem:[#allocation4] sm:$0xff]
      %v868 = vpack.c.bf16 %v866, %v866
      %v869 = vld [vmem:[%s508] sm:$0xf]
      %v871 = vsel %vm760, %v868, 0
      %v874 = vsel %vm821, %v869, 0
      %876 = vmatprep.subr.bf16.mxu0 0
      %877 = vmatpush1.bf16.msra.mxu0 %v874
      %878 = vmatprep.subr.bf16.mxu0 0
      %879 = vmatpush1.bf16.msra.mxu0 0
      %880 = vmatprep.subr.bf16.mxu0 0
      %881 = vmatpush1.bf16.msra.mxu0 0
      %882 = vmatprep.subr.bf16.mxu0 0
      %883 = vmatpush1.bf16.msra.mxu0 0
      %884 = vmatprep.subr.bf16.mxu0 0
      %885 = vmatpush1.bf16.msra.mxu0 0
      %886 = vmatprep.subr.bf16.mxu0 0
      %887 = vmatpush1.bf16.msra.mxu0 0
      %888 = vmatprep.subr.bf16.mxu0 0
      %889 = vmatpush1.bf16.msra.mxu0 0
      %890 = vmatprep.subr.bf16.mxu0 0
      %891 = vmatpush1.bf16.msra.mxu0 0
      %892 = vmatprep.subr.bf16.mxu0 0
      %893 = vmatpush1.bf16.msra.mxu0 0
      %894 = vmatprep.subr.bf16.mxu0 0
      %895 = vmatpush1.bf16.msra.mxu0 0
      %896 = vmatprep.subr.bf16.mxu0 0
      %897 = vmatpush1.bf16.msra.mxu0 0
      %898 = vmatprep.subr.bf16.mxu0 0
      %899 = vmatpush1.bf16.msra.mxu0 0
      %900 = vmatprep.subr.bf16.mxu0 0
      %901 = vmatpush1.bf16.msra.mxu0 0
      %902 = vmatprep.subr.bf16.mxu0 0
      %903 = vmatpush1.bf16.msra.mxu0 0
      %904 = vmatprep.subr.bf16.mxu0 0
      %905 = vmatpush1.bf16.msra.mxu0 0
      %906 = vmatprep.subr.bf16.mxu0 0
      %907 = vmatpush1.bf16.msra.mxu0 0
      %908 = vmatprep.mubr.bf16.mxu0 0
      %909 = vmatmul.mubr.bf16.gmra.mrb[0].mxu0 %v871
      %v910 = vpop.f32.mrb[0].mxu0
      %v911 = vadd.f32 0.0, %v910
      %v912 = vpop.f32.mrb[0].mxu0
      %v913 = vpop.f32.mrb[0].mxu0
      %v914 = vpop.f32.mrb[0].mxu0
      %915 = vdwg.mxu0
      %v916 = vadd.f32 %v867, %v911
      %917 = vst.msk [vmem:[#allocation4] sm:$0xff] %vm587, %v916
      %p918 = scmp.eq.s32.totalorder %s27, 3
      // Predicated region
      $region69: #{forward.5} parent=63 // pred_check
        %p919 = pneg %p918
      $region70: #{forward.5} parent=63 // pred_check_branch
        %921 = sbr.rel (%p919) target = $region72
      $region71: #{forward.5} parent=63 // pred_region
        %v922 = vld [vmem:[%s480] sm:$0xf]
        %v923 = vunpack.c.l.bf16 %v922
        %v924 = vld [vmem:[#allocation4] sm:$0xff]
        %v925 = vadd.f32 %v923, %v924
        %v926 = vld [vmem:[%s10] sm:$0x1]
        %v928 = vlaneseq
        %v929 = vshrl.u32 %v928, 7
        %v930 = vsub.s32 0, %v929
        %v931 = vrot.slane %v926, %v930
        %v933 = vadd.f32 %v925, %v931
        %v934 = vpack.c.bf16 %v933, %v933
        %vm935 = vcmask 257024
        %936 = vst.msk [vmem:[%s512] sm:$0xf] %vm935, %v934
      $region72: #{forward.5} parent=63 // pred_fallthru
        _
      %p937 = scmp.lt.s32.totalorder %s26, 1
      %s938 = scalar_select %p937, %s26, 1
      %s939 = smul.addr %s938, 4
      %s940 = scalar_lea.vmem %s11, %s939
      // Predicated region
      $region73: #{forward.5} parent=63 // pred_check
        %p941 = pneg %p323
      $region74: #{forward.5} parent=63 // pred_check_branch
        %943 = sbr.rel (%p941) target = $region76
      $region75: #{forward.5} parent=63 // pred_region
        _
      $region76: #{forward.5} parent=63 // pred_fallthru
        _
    $region64: #{forward.5} parent=5 // pred_fallthru
      _
    %p944 = scmp.le.s32.totalorder 2, %s17
    // Predicated region
    $region77: #{forward.5} parent=5 // pred_check
      %p945 = pneg %p944
    $region78: #{forward.5} parent=5 // pred_check_branch
      %947 = sbr.rel (%p945) target = $region80
    $region79: #{forward.5} parent=5 // pred_region
      %s948 = ssub.s32 %s17, 2
      // Predicated region
      $region81: #{forward.5} parent=79 // pred_check
        %p949 = pneg %p329
      $region82: #{forward.5} parent=79 // pred_check_branch
        %951 = sbr.rel (%p949) target = $region84
      $region83: #{forward.5} parent=79 // pred_region
        %p952 = scmp.lt.s32.totalorder %s28, 1
        %s953 = scalar_select %p952, %s28, 1
        %s954 = smul.addr %s953, 4
        %s955 = scalar_lea.vmem %s11, %s954
      $region84: #{forward.5} parent=79 // pred_fallthru
        _
    $region80: #{forward.5} parent=5 // pred_fallthru
      _
  $region6: #{forward.5} parent=0 // loop_footer
    %s21 = sadd.s32 1, %s17
  $region7: #{forward.5} parent=0 // loop_footer_branch
    %16 = sbr.rel target = $region3
  $region8: #{forward.5} parent=0 // loop_exit
    _

</llo_original>
